<compile_context>
chip_gen: v7x
topology: tpu7x:2x2x1
jax: 0.10.0
libtpu: 0.0.40
codegen_flags: <defaults>
</compile_context>

<pallas_src>
import jax
import jax.numpy as jnp
from jax import lax
from jax.experimental import pallas as pl
from jax.experimental.pallas import tpu as pltpu


# ---------------------------------------------------------------------------
# Small host-side helpers
# ---------------------------------------------------------------------------

def _cdiv(a, b):
    return -(-a // b)


def _vmem_capacity_bytes():
    """Physical VMEM of the local TPU; conservative 64 MiB fallback (v7x-class)."""
    try:
        info = pltpu.get_tpu_info()
        for name in ("vmem_capacity_bytes", "vmem_bytes", "vmem_capacity"):
            cap = getattr(info, name, None)
            if cap:
                return int(cap)
    except Exception:
        pass
    return 64 << 20


def _num_tensorcores_per_chip():
    """2 on megacore-style chips (v4/v5p/v7x), 1 on v5e/v6e. Heuristic, perf-only."""
    try:
        kind = jax.devices()[0].device_kind.lower()
    except Exception:
        return 1
    if ("v7" in kind) or ("v4" in kind) or ("v5p" in kind):
        return 2
    return 1


# ---------------------------------------------------------------------------
# Fused kernel: 1x1 convs -> column-softmax attention -> conv_mask + residual
# One grid step handles a block of `bt` batches (unrolled inner loop).
# ---------------------------------------------------------------------------

def _nonlocal_kernel(w_phi_ref, w_theta_ref, w_g_ref, w_mask_ref, x_ref, o_ref):
    bt, _, HW = x_ref.shape
    N = HW // 2

    # Tiny weights, read once per grid step (hoisted out of the batch loop).
    w_phi = w_phi_ref[...]      # (ic, C)  bf16
    w_theta = w_theta_ref[...]  # (ic, C)  bf16
    w_g = w_g_ref[...]          # (ic, C)  bf16
    w_mask = w_mask_ref[...]    # (C, ic)  bf16

    # Transposes folded into dot_general dimension_numbers (no relayouts).
    dn_tn = (((0,), (0,)), ((), ()))   # contract the sublane (channel) axes
    dn_nt = (((1,), (1,)), ((), ()))   # contract the lane axes

    def one_batch(i, carry):
        x_i = x_ref[i]                                  # (C, HW) f32
        x_bf = x_i.astype(jnp.bfloat16)                 # MXU operand

        # 1x1 convs: three small matmuls as plain values (no scratch round
        # trip, no misaligned sublane slicing).  f32 accumulation.
        phi = jnp.dot(w_phi, x_bf, preferred_element_type=jnp.float32)     # (ic, HW)
        theta = jnp.dot(w_theta, x_bf, preferred_element_type=jnp.float32)  # (ic, HW)
        g = jnp.dot(w_g, x_bf, preferred_element_type=jnp.float32)          # (ic, HW)

        # PyTorch's .view(b, c, -1) on the (b, c/2, h, w) conv output splits
        # each channel row into two N-wide lane halves; the attention
        # contractions decompose over those halves, so no reshape / transpose
        # is ever materialized.  Lane slices at 0 / N are 128-aligned.
        phi_a = phi[:, :N].astype(jnp.bfloat16)
        phi_b = phi[:, N:].astype(jnp.bfloat16)
        theta_a = theta[:, :N].astype(jnp.bfloat16)
        theta_b = theta[:, N:].astype(jnp.bfloat16)

        # s[n, m] = sum_c theta_v[n, c] * phi_v[c, m]
        s = lax.dot_general(theta_a, phi_a, dn_tn,
                            preferred_element_type=jnp.float32)
        s = s + lax.dot_general(theta_b, phi_b, dn_tn,
                                preferred_element_type=jnp.float32)          # (N, N) f32

        # nn.Softmax(dim=1): softmax over the row axis (per score column).
        # Elementwise / reduction math stays f32 (v5e VPU/EUP have no bf16).
        col_max = jnp.max(s, axis=0, keepdims=True)                          # (1, N)
        p = jnp.exp(s - col_max)                                             # (N, N) f32
        inv_den = pl.reciprocal(jnp.sum(p, axis=0, keepdims=True),
                                approx=False)                                # (1, N)
        p_bf = p.astype(jnp.bfloat16)

        # Colsum factorization: fold 1/denominator into g's columns instead of
        # dividing the (N, N) probability matrix.
        g_a = (g[:, :N] * inv_den).astype(jnp.bfloat16)                      # (ic, N)
        g_b = (g[:, N:] * inv_den).astype(jnp.bfloat16)                      # (ic, N)

        # z[j, n] = sum_m g_scaled[j, m] * p[n, m]  (contract lane axes).
        z_a = lax.dot_general(g_a, p_bf, dn_nt,
                              preferred_element_type=jnp.float32)            # (ic, N)
        z_b = lax.dot_general(g_b, p_bf, dn_nt,
                              preferred_element_type=jnp.float32)            # (ic, N)

        # Merged epilogue: one full-lane-width conv_mask matmul + residual,
        # written as a single lane-dense (C, HW) store.
        z = jnp.concatenate([z_a, z_b], axis=-1).astype(jnp.bfloat16)        # (ic, HW)
        y = jnp.dot(w_mask, z, preferred_element_type=jnp.float32) + x_i     # (C, HW) f32
        o_ref[i] = y.astype(o_ref.dtype)
        return carry

    lax.fori_loop(0, bt, one_batch, 0, unroll=True)


# ---------------------------------------------------------------------------
# Wrapper: one pallas_call, grid over batch blocks.
# ---------------------------------------------------------------------------

def nonlocal_forward(x, w_phi, w_theta, w_g, w_mask):
    B, C, H, W = x.shape
    HW = H * W
    ic = C // 2
    N = HW // 2  # consequence of .view(b, c, -1) on the (b, c//2, h, w) conv output

    x_flat = x.reshape(B, C, HW)                       # free row-major reshape

    # bf16 MXU operands (f32 accumulation in-kernel); weights cast once here.
    w_phi_bf = w_phi.astype(jnp.bfloat16)
    w_theta_bf = w_theta.astype(jnp.bfloat16)
    w_g_bf = w_g.astype(jnp.bfloat16)
    w_mask_bf = w_mask.astype(jnp.bfloat16)

    # --- generation-aware VMEM budget --------------------------------------
    vmem_cap = _vmem_capacity_bytes()
    vmem_ceiling = (vmem_cap // 8) * 7        # leave headroom for Mosaic internals

    # Per-batch working set (one batch's intermediates live at a time inside
    # the unrolled loop).  For much larger N the (N, N) score would need to be
    # row-tiled (the colsum factorization already supports that); unnecessary
    # at these shapes.
    work_bytes = (4 * 3 * N * N               # s / p / exp temporaries (f32)
                  + 2 * N * N                 # p in bf16
                  + 4 * 10 * ic * HW          # phi/theta/g/z + halves (upper bound)
                  + (2 << 20))                # slack for compiler temporaries
    per_batch_block = 2 * 2 * (4 * C * HW)    # x + out blocks, double buffered, f32
    bt_cap = max(1, int((vmem_ceiling - work_bytes) // per_batch_block))

    # --- batch amortization / megacore sharding -----------------------------
    # 1-TC chips (v5e/v6e): fuse all batches into a single grid step.
    # 2-TC chips (v7x-class): keep >= 2 parallel steps so both cores get work.
    min_steps = 2 if (_num_tensorcores_per_chip() >= 2 and B >= 2) else 1
    bt = max(1, min(_cdiv(B, min_steps), bt_cap))
    num_steps = _cdiv(B, bt)
    b_pad = num_steps * bt
    if b_pad != B:
        x_flat = jnp.pad(x_flat, ((0, b_pad - B), (0, 0), (0, 0)))

    est_bytes = per_batch_block * bt + work_bytes
    vmem_limit = int(min(max(est_bytes, 32 << 20), vmem_ceiling))

    out = pl.pallas_call(
        _nonlocal_kernel,
        out_shape=jax.ShapeDtypeStruct((b_pad, C, HW), x.dtype),
        grid=(num_steps,),
        in_specs=[
            pl.BlockSpec((ic, C), lambda b: (0, 0)),           # w_phi
            pl.BlockSpec((ic, C), lambda b: (0, 0)),           # w_theta
            pl.BlockSpec((ic, C), lambda b: (0, 0)),           # w_g
            pl.BlockSpec((C, ic), lambda b: (0, 0)),           # w_mask
            pl.BlockSpec((bt, C, HW), lambda b: (b, 0, 0)),    # x, block of bt batches
        ],
        out_specs=pl.BlockSpec((bt, C, HW), lambda b: (b, 0, 0)),
        compiler_params=pltpu.CompilerParams(
            dimension_semantics=("parallel",),
            vmem_limit_bytes=vmem_limit,
        ),
    )(w_phi_bf, w_theta_bf, w_g_bf, w_mask_bf, x_flat)

    if b_pad != B:
        out = out[:B]
    return out.reshape(B, C, H, W)


# ---------------------------------------------------------------------------
# Pure-JAX reference (mirrors the PyTorch forward exactly, f32 throughout)
# ---------------------------------------------------------------------------

def nonlocal_reference(x, w_phi, w_theta, w_g, w_mask):
    B, C, H, W = x.shape
    HW = H * W
    N = HW // 2
    ic = C // 2
    xf = x.reshape(B, C, HW)
    phi = jnp.einsum("oi,bis->bos", w_phi, xf)
    theta = jnp.einsum("oi,bis->bos", w_theta, xf)
    g = jnp.einsum("oi,bis->bos", w_g, xf)
    phi_v = phi.reshape(B, C, N)
    theta_v = jnp.transpose(theta.reshape(B, C, N), (0, 2, 1))
    g_v = jnp.transpose(g.reshape(B, C, N), (0, 2, 1))
    s = jnp.einsum("bnc,bcm->bnm", theta_v, phi_v)
    a = jax.nn.softmax(s, axis=1)
    y = jnp.einsum("bnm,bmc->bnc", a, g_v)
    y2 = jnp.transpose(y, (0, 2, 1)).reshape(B, ic, HW)
    mask = jnp.einsum("oi,bis->bos", w_mask, y2)
    return (mask + xf).reshape(B, C, H, W)


# ---------------------------------------------------------------------------
# Main
# ---------------------------------------------------------------------------

if __name__ == "__main__":
    B, C, H, W = 2, 4, 16, 16
    ic = C // 2

    key = jax.random.PRNGKey(0)
    kx, kphi, ktheta, kg, kmask = jax.random.split(key, 5)

    x = jax.random.normal(kx, (B, C, H, W), dtype=jnp.float32)

    # PyTorch Conv2d(..., bias=False) weight (out, in, 1, 1) stored as (out, in).
    def init_w(k, out_c, in_c):
        bound = 1.0 / jnp.sqrt(jnp.float32(in_c))
        return jax.random.uniform(k, (out_c, in_c), jnp.float32, -bound, bound)

    w_phi = init_w(kphi, ic, C)
    w_theta = init_w(ktheta, ic, C)
    w_g = init_w(kg, ic, C)
    w_mask = init_w(kmask, C, ic)

    out = nonlocal_forward(x, w_phi, w_theta, w_g, w_mask)
    out = jax.block_until_ready(out)

    ref = nonlocal_reference(x, w_phi, w_theta, w_g, w_mask)
    assert out.shape == (B, C, H, W)
    max_err = float(jnp.max(jnp.abs(out - ref)))
    # Tolerance relaxed vs. the pure-f32 version because MXU operands are bf16
    # (accumulation stays f32), as recommended for v5e/v6e/v7x.
    assert jnp.allclose(out, ref, atol=5e-2, rtol=5e-2), (
        f"mismatch vs reference, max abs err={max_err}")
    print("KERNEL_OK")
</pallas_src>

<mosaic_0001>
module attributes {stable_mosaic.version = 11 : i64} {
  func.func @_nonlocal_kernel(%arg0: i32, %arg1: memref<2x4xbf16, #tpu.memory_space<vmem>>, %arg2: memref<2x4xbf16, #tpu.memory_space<vmem>>, %arg3: memref<2x4xbf16, #tpu.memory_space<vmem>>, %arg4: memref<4x2xbf16, #tpu.memory_space<vmem>>, %arg5: memref<2x4x256xf32, #tpu.memory_space<vmem>>, %arg6: memref<2x4x256xf32, #tpu.memory_space<vmem>>) attributes {dimension_semantics = [#tpu.dimension_semantics<parallel>], iteration_bounds = array<i64: 1>, scalar_prefetch = 0 : i64, scratch_operands = 0 : i64, tpu.core_type = #tpu.core_type<tc>, window_params = [{pipeline_mode = #tpu.pipeline_mode<synchronous>, transform_indices = @transform_0, window_bounds = array<i64: 2, 4>}, {pipeline_mode = #tpu.pipeline_mode<synchronous>, transform_indices = @transform_1, window_bounds = array<i64: 2, 4>}, {pipeline_mode = #tpu.pipeline_mode<synchronous>, transform_indices = @transform_2, window_bounds = array<i64: 2, 4>}, {pipeline_mode = #tpu.pipeline_mode<synchronous>, transform_indices = @transform_3, window_bounds = array<i64: 4, 2>}, {transform_indices = @transform_4, window_bounds = array<i64: 2, 4, 256>}, {transform_indices = @transform_5, window_bounds = array<i64: 2, 4, 256>}]} {
    %c0 = arith.constant 0 : index
    %c0_0 = arith.constant 0 : index
    %0 = vector.load %arg1[%c0, %c0_0] : memref<2x4xbf16, #tpu.memory_space<vmem>>, vector<2x4xbf16>
    %c0_1 = arith.constant 0 : index
    %c0_2 = arith.constant 0 : index
    %1 = vector.load %arg2[%c0_1, %c0_2] : memref<2x4xbf16, #tpu.memory_space<vmem>>, vector<2x4xbf16>
    %c0_3 = arith.constant 0 : index
    %c0_4 = arith.constant 0 : index
    %2 = vector.load %arg3[%c0_3, %c0_4] : memref<2x4xbf16, #tpu.memory_space<vmem>>, vector<2x4xbf16>
    %c0_5 = arith.constant 0 : index
    %c0_6 = arith.constant 0 : index
    %3 = vector.load %arg4[%c0_5, %c0_6] : memref<4x2xbf16, #tpu.memory_space<vmem>>, vector<4x2xbf16>
    %c0_i32 = arith.constant 0 : i32
    %4 = arith.index_cast %c0_i32 : i32 to index
    %c0_7 = arith.constant 0 : index
    %c0_8 = arith.constant 0 : index
    %5 = vector.load %arg5[%4, %c0_7, %c0_8] : memref<2x4x256xf32, #tpu.memory_space<vmem>>, vector<1x4x256xf32>
    %6 = vector.shape_cast %5 : vector<1x4x256xf32> to vector<4x256xf32>
    %7 = arith.truncf %6 : vector<4x256xf32> to vector<4x256xbf16>
    %cst = arith.constant dense<0.000000e+00> : vector<2x256xf32>
    %8 = tpu.matmul %0, %7, %cst {dimension_numbers = #tpu.dot_dimension_numbers<[1], [0], [0], [1], [0, 0, 1, 1], [], []>} : vector<2x4xbf16>, vector<4x256xbf16>, vector<2x256xf32> -> vector<2x256xf32>
    %cst_9 = arith.constant dense<0.000000e+00> : vector<2x256xf32>
    %9 = tpu.matmul %1, %7, %cst_9 {dimension_numbers = #tpu.dot_dimension_numbers<[1], [0], [0], [1], [0, 0, 1, 1], [], []>} : vector<2x4xbf16>, vector<4x256xbf16>, vector<2x256xf32> -> vector<2x256xf32>
    %cst_10 = arith.constant dense<0.000000e+00> : vector<2x256xf32>
    %10 = tpu.matmul %2, %7, %cst_10 {dimension_numbers = #tpu.dot_dimension_numbers<[1], [0], [0], [1], [0, 0, 1, 1], [], []>} : vector<2x4xbf16>, vector<4x256xbf16>, vector<2x256xf32> -> vector<2x256xf32>
    %11 = vector.extract_strided_slice %8 {offsets = [0, 0], sizes = [2, 128], strides = [1, 1]} : vector<2x256xf32> to vector<2x128xf32>
    %12 = arith.truncf %11 : vector<2x128xf32> to vector<2x128xbf16>
    %13 = vector.extract_strided_slice %8 {offsets = [0, 128], sizes = [2, 128], strides = [1, 1]} : vector<2x256xf32> to vector<2x128xf32>
    %14 = arith.truncf %13 : vector<2x128xf32> to vector<2x128xbf16>
    %15 = vector.extract_strided_slice %9 {offsets = [0, 0], sizes = [2, 128], strides = [1, 1]} : vector<2x256xf32> to vector<2x128xf32>
    %16 = arith.truncf %15 : vector<2x128xf32> to vector<2x128xbf16>
    %17 = vector.extract_strided_slice %9 {offsets = [0, 128], sizes = [2, 128], strides = [1, 1]} : vector<2x256xf32> to vector<2x128xf32>
    %18 = arith.truncf %17 : vector<2x128xf32> to vector<2x128xbf16>
    %cst_11 = arith.constant dense<0.000000e+00> : vector<128x128xf32>
    %19 = tpu.matmul %16, %12, %cst_11 {dimension_numbers = #tpu.dot_dimension_numbers<[0], [0], [1], [1], [0, 1, 1, 1], [], []>} : vector<2x128xbf16>, vector<2x128xbf16>, vector<128x128xf32> -> vector<128x128xf32>
    %cst_12 = arith.constant dense<0.000000e+00> : vector<128x128xf32>
    %20 = tpu.matmul %18, %14, %cst_12 {dimension_numbers = #tpu.dot_dimension_numbers<[0], [0], [1], [1], [0, 1, 1, 1], [], []>} : vector<2x128xbf16>, vector<2x128xbf16>, vector<128x128xf32> -> vector<128x128xf32>
    %21 = arith.addf %19, %20 : vector<128x128xf32>
    %cst_13 = arith.constant dense<0xFF800000> : vector<128xf32>
    %22 = vector.multi_reduction <maximumf>, %21, %cst_13 [0] : vector<128x128xf32> to vector<128xf32>
    %23 = vector.shape_cast %22 : vector<128xf32> to vector<1x128xf32>
    %24 = vector.broadcast %23 : vector<1x128xf32> to vector<128x128xf32>
    %25 = arith.subf %21, %24 : vector<128x128xf32>
    %26 = math.exp %25 : vector<128x128xf32>
    %cst_14 = arith.constant dense<0.000000e+00> : vector<128xf32>
    %27 = vector.multi_reduction <add>, %26, %cst_14 [0] : vector<128x128xf32> to vector<128xf32>
    %28 = vector.shape_cast %27 : vector<128xf32> to vector<1x128xf32>
    %29 = tpu.reciprocal %28 : vector<1x128xf32> -> vector<1x128xf32>
    %30 = arith.truncf %26 : vector<128x128xf32> to vector<128x128xbf16>
    %31 = vector.extract_strided_slice %10 {offsets = [0, 0], sizes = [2, 128], strides = [1, 1]} : vector<2x256xf32> to vector<2x128xf32>
    %32 = vector.broadcast %29 : vector<1x128xf32> to vector<2x128xf32>
    %33 = arith.mulf %31, %32 : vector<2x128xf32>
    %34 = arith.truncf %33 : vector<2x128xf32> to vector<2x128xbf16>
    %35 = vector.extract_strided_slice %10 {offsets = [0, 128], sizes = [2, 128], strides = [1, 1]} : vector<2x256xf32> to vector<2x128xf32>
    %36 = vector.broadcast %29 : vector<1x128xf32> to vector<2x128xf32>
    %37 = arith.mulf %35, %36 : vector<2x128xf32>
    %38 = arith.truncf %37 : vector<2x128xf32> to vector<2x128xbf16>
    %cst_15 = arith.constant dense<0.000000e+00> : vector<2x128xf32>
    %39 = tpu.matmul %34, %30, %cst_15 {dimension_numbers = #tpu.dot_dimension_numbers<[1], [1], [0], [0], [0, 0, 1, 0], [], []>} : vector<2x128xbf16>, vector<128x128xbf16>, vector<2x128xf32> -> vector<2x128xf32>
    %cst_16 = arith.constant dense<0.000000e+00> : vector<2x128xf32>
    %40 = tpu.matmul %38, %30, %cst_16 {dimension_numbers = #tpu.dot_dimension_numbers<[1], [1], [0], [0], [0, 0, 1, 0], [], []>} : vector<2x128xbf16>, vector<128x128xbf16>, vector<2x128xf32> -> vector<2x128xf32>
    %41 = tpu.concatenate %39, %40 in 1 : vector<2x128xf32>, vector<2x128xf32> -> vector<2x256xf32>
    %42 = arith.truncf %41 : vector<2x256xf32> to vector<2x256xbf16>
    %cst_17 = arith.constant dense<0.000000e+00> : vector<4x256xf32>
    %43 = tpu.matmul %3, %42, %cst_17 {dimension_numbers = #tpu.dot_dimension_numbers<[1], [0], [0], [1], [0, 0, 1, 1], [], []>} : vector<4x2xbf16>, vector<2x256xbf16>, vector<4x256xf32> -> vector<4x256xf32>
    %44 = arith.addf %43, %6 : vector<4x256xf32>
    %45 = arith.index_cast %c0_i32 : i32 to index
    %c0_18 = arith.constant 0 : index
    %c0_19 = arith.constant 0 : index
    %46 = vector.load %arg6[%45, %c0_18, %c0_19] : memref<2x4x256xf32, #tpu.memory_space<vmem>>, vector<1x4x256xf32>
    %47 = vector.shape_cast %46 : vector<1x4x256xf32> to vector<4x256xf32>
    %48 = vector.shape_cast %44 : vector<4x256xf32> to vector<1x4x256xf32>
    tpu.vector_store %arg6[%45, %c0_18, %c0_19], %48 {strides = array<i32>} : memref<2x4x256xf32, #tpu.memory_space<vmem>>, vector<1x4x256xf32>,
    %c1_i32 = arith.constant 1 : i32
    %49 = arith.index_cast %c1_i32 : i32 to index
    %c0_20 = arith.constant 0 : index
    %c0_21 = arith.constant 0 : index
    %50 = vector.load %arg5[%49, %c0_20, %c0_21] : memref<2x4x256xf32, #tpu.memory_space<vmem>>, vector<1x4x256xf32>
    %51 = vector.shape_cast %50 : vector<1x4x256xf32> to vector<4x256xf32>
    %52 = arith.truncf %51 : vector<4x256xf32> to vector<4x256xbf16>
    %cst_22 = arith.constant dense<0.000000e+00> : vector<2x256xf32>
    %53 = tpu.matmul %0, %52, %cst_22 {dimension_numbers = #tpu.dot_dimension_numbers<[1], [0], [0], [1], [0, 0, 1, 1], [], []>} : vector<2x4xbf16>, vector<4x256xbf16>, vector<2x256xf32> -> vector<2x256xf32>
    %cst_23 = arith.constant dense<0.000000e+00> : vector<2x256xf32>
    %54 = tpu.matmul %1, %52, %cst_23 {dimension_numbers = #tpu.dot_dimension_numbers<[1], [0], [0], [1], [0, 0, 1, 1], [], []>} : vector<2x4xbf16>, vector<4x256xbf16>, vector<2x256xf32> -> vector<2x256xf32>
    %cst_24 = arith.constant dense<0.000000e+00> : vector<2x256xf32>
    %55 = tpu.matmul %2, %52, %cst_24 {dimension_numbers = #tpu.dot_dimension_numbers<[1], [0], [0], [1], [0, 0, 1, 1], [], []>} : vector<2x4xbf16>, vector<4x256xbf16>, vector<2x256xf32> -> vector<2x256xf32>
    %56 = vector.extract_strided_slice %53 {offsets = [0, 0], sizes = [2, 128], strides = [1, 1]} : vector<2x256xf32> to vector<2x128xf32>
    %57 = arith.truncf %56 : vector<2x128xf32> to vector<2x128xbf16>
    %58 = vector.extract_strided_slice %53 {offsets = [0, 128], sizes = [2, 128], strides = [1, 1]} : vector<2x256xf32> to vector<2x128xf32>
    %59 = arith.truncf %58 : vector<2x128xf32> to vector<2x128xbf16>
    %60 = vector.extract_strided_slice %54 {offsets = [0, 0], sizes = [2, 128], strides = [1, 1]} : vector<2x256xf32> to vector<2x128xf32>
    %61 = arith.truncf %60 : vector<2x128xf32> to vector<2x128xbf16>
    %62 = vector.extract_strided_slice %54 {offsets = [0, 128], sizes = [2, 128], strides = [1, 1]} : vector<2x256xf32> to vector<2x128xf32>
    %63 = arith.truncf %62 : vector<2x128xf32> to vector<2x128xbf16>
    %cst_25 = arith.constant dense<0.000000e+00> : vector<128x128xf32>
    %64 = tpu.matmul %61, %57, %cst_25 {dimension_numbers = #tpu.dot_dimension_numbers<[0], [0], [1], [1], [0, 1, 1, 1], [], []>} : vector<2x128xbf16>, vector<2x128xbf16>, vector<128x128xf32> -> vector<128x128xf32>
    %cst_26 = arith.constant dense<0.000000e+00> : vector<128x128xf32>
    %65 = tpu.matmul %63, %59, %cst_26 {dimension_numbers = #tpu.dot_dimension_numbers<[0], [0], [1], [1], [0, 1, 1, 1], [], []>} : vector<2x128xbf16>, vector<2x128xbf16>, vector<128x128xf32> -> vector<128x128xf32>
    %66 = arith.addf %64, %65 : vector<128x128xf32>
    %cst_27 = arith.constant dense<0xFF800000> : vector<128xf32>
    %67 = vector.multi_reduction <maximumf>, %66, %cst_27 [0] : vector<128x128xf32> to vector<128xf32>
    %68 = vector.shape_cast %67 : vector<128xf32> to vector<1x128xf32>
    %69 = vector.broadcast %68 : vector<1x128xf32> to vector<128x128xf32>
    %70 = arith.subf %66, %69 : vector<128x128xf32>
    %71 = math.exp %70 : vector<128x128xf32>
    %cst_28 = arith.constant dense<0.000000e+00> : vector<128xf32>
    %72 = vector.multi_reduction <add>, %71, %cst_28 [0] : vector<128x128xf32> to vector<128xf32>
    %73 = vector.shape_cast %72 : vector<128xf32> to vector<1x128xf32>
    %74 = tpu.reciprocal %73 : vector<1x128xf32> -> vector<1x128xf32>
    %75 = arith.truncf %71 : vector<128x128xf32> to vector<128x128xbf16>
    %76 = vector.extract_strided_slice %55 {offsets = [0, 0], sizes = [2, 128], strides = [1, 1]} : vector<2x256xf32> to vector<2x128xf32>
    %77 = vector.broadcast %74 : vector<1x128xf32> to vector<2x128xf32>
    %78 = arith.mulf %76, %77 : vector<2x128xf32>
    %79 = arith.truncf %78 : vector<2x128xf32> to vector<2x128xbf16>
    %80 = vector.extract_strided_slice %55 {offsets = [0, 128], sizes = [2, 128], strides = [1, 1]} : vector<2x256xf32> to vector<2x128xf32>
    %81 = vector.broadcast %74 : vector<1x128xf32> to vector<2x128xf32>
    %82 = arith.mulf %80, %81 : vector<2x128xf32>
    %83 = arith.truncf %82 : vector<2x128xf32> to vector<2x128xbf16>
    %cst_29 = arith.constant dense<0.000000e+00> : vector<2x128xf32>
    %84 = tpu.matmul %79, %75, %cst_29 {dimension_numbers = #tpu.dot_dimension_numbers<[1], [1], [0], [0], [0, 0, 1, 0], [], []>} : vector<2x128xbf16>, vector<128x128xbf16>, vector<2x128xf32> -> vector<2x128xf32>
    %cst_30 = arith.constant dense<0.000000e+00> : vector<2x128xf32>
    %85 = tpu.matmul %83, %75, %cst_30 {dimension_numbers = #tpu.dot_dimension_numbers<[1], [1], [0], [0], [0, 0, 1, 0], [], []>} : vector<2x128xbf16>, vector<128x128xbf16>, vector<2x128xf32> -> vector<2x128xf32>
    %86 = tpu.concatenate %84, %85 in 1 : vector<2x128xf32>, vector<2x128xf32> -> vector<2x256xf32>
    %87 = arith.truncf %86 : vector<2x256xf32> to vector<2x256xbf16>
    %cst_31 = arith.constant dense<0.000000e+00> : vector<4x256xf32>
    %88 = tpu.matmul %3, %87, %cst_31 {dimension_numbers = #tpu.dot_dimension_numbers<[1], [0], [0], [1], [0, 0, 1, 1], [], []>} : vector<4x2xbf16>, vector<2x256xbf16>, vector<4x256xf32> -> vector<4x256xf32>
    %89 = arith.addf %88, %51 : vector<4x256xf32>
    %90 = arith.index_cast %c1_i32 : i32 to index
    %c0_32 = arith.constant 0 : index
    %c0_33 = arith.constant 0 : index
    %91 = vector.load %arg6[%90, %c0_32, %c0_33] : memref<2x4x256xf32, #tpu.memory_space<vmem>>, vector<1x4x256xf32>
    %92 = vector.shape_cast %91 : vector<1x4x256xf32> to vector<4x256xf32>
    %93 = vector.shape_cast %89 : vector<4x256xf32> to vector<1x4x256xf32>
    tpu.vector_store %arg6[%90, %c0_32, %c0_33], %93 {strides = array<i32>} : memref<2x4x256xf32, #tpu.memory_space<vmem>>, vector<1x4x256xf32>,
    %c2_i32 = arith.constant 2 : i32
    return
  }
  func.func @transform_0(%arg0: i32) -> (i32, i32) {
    %c0_i32 = arith.constant 0 : i32
    %c0_i32_0 = arith.constant 0 : i32
    %c0_i32_1 = arith.constant 0 : i32
    return %c0_i32, %c0_i32_0 : i32, i32
  }
  func.func @transform_1(%arg0: i32) -> (i32, i32) {
    %c0_i32 = arith.constant 0 : i32
    %c0_i32_0 = arith.constant 0 : i32
    %c0_i32_1 = arith.constant 0 : i32
    return %c0_i32, %c0_i32_0 : i32, i32
  }
  func.func @transform_2(%arg0: i32) -> (i32, i32) {
    %c0_i32 = arith.constant 0 : i32
    %c0_i32_0 = arith.constant 0 : i32
    %c0_i32_1 = arith.constant 0 : i32
    return %c0_i32, %c0_i32_0 : i32, i32
  }
  func.func @transform_3(%arg0: i32) -> (i32, i32) {
    %c0_i32 = arith.constant 0 : i32
    %c0_i32_0 = arith.constant 0 : i32
    %c0_i32_1 = arith.constant 0 : i32
    return %c0_i32, %c0_i32_0 : i32, i32
  }
  func.func @transform_4(%arg0: i32) -> (i32, i32, i32) {
    %c0_i32 = arith.constant 0 : i32
    %c0_i32_0 = arith.constant 0 : i32
    %c0_i32_1 = arith.constant 0 : i32
    return %arg0, %c0_i32, %c0_i32_0 : i32, i32, i32
  }
  func.func @transform_5(%arg0: i32) -> (i32, i32, i32) {
    %c0_i32 = arith.constant 0 : i32
    %c0_i32_0 = arith.constant 0 : i32
    %c0_i32_1 = arith.constant 0 : i32
    return %arg0, %c0_i32, %c0_i32_0 : i32, i32, i32
  }
}

</mosaic_0001>

<llo_original>
// kernel: tpu_custom_call.1
$region0: #{tpu_custom_call.1}
  #allocation0 [shape = 'u32[]', space=smem, size = 0x4, offset = 0x4, fixed_abs, tag = 'smem constant byte address 0x4 - core index']
  #allocation1 [shape = 'u32[144,128]{1,0:T(1,128)}', space=vmem, size = 0x12000, scoped, tag = 'internal scratch']
  %s0 = inlined_call_operand.vmem [shape: bf16[2,4], index: 0, kind: input, shape index: {}]
  %s1 = inlined_call_operand.vmem [shape: bf16[2,4], index: 1, kind: input, shape index: {}]
  %s2 = inlined_call_operand.hbm [shape: bf16[2,4], index: 2, kind: input, shape index: {}]
  %s3 = inlined_call_operand.vmem [shape: bf16[4,2], index: 3, kind: input, shape index: {}]
  %s4 = inlined_call_operand.vmem [shape: f32[2,4,256], index: 4, kind: input, shape index: {}]
  %s5 = inlined_call_operand.hbm [shape: f32[2,4,256], index: 5, kind: output, shape index: {}]
  %s6 = sld [smem:[#allocation0]]
  $region34: #{tpu_custom_call.1} parent=0
    _
  %s8 = ssub.s32 1, %s6
  %s9 = scalar_select 0, %s8, %s6
  $region1: #{tpu_custom_call.1} parent=0
    #allocation2 [shape = 'u8[512]{0}', space=vmem, size = 0x400, scoped, tag = 'input window, operand 2, single buffered']
    #allocation3 [shape = 's32[1]{0}', space=sflag, size = 0x4, scoped, tag = 'scoped memory for tpu_custom_call.1']
    #allocation4 [shape = 's32[1]{0}', space=sflag, size = 0x4, scoped, tag = 'scoped memory for tpu_custom_call.1']
    #allocation5 [shape = 'u8[8192]{0}', space=vmem, size = 0x2000, scoped, tag = 'output window, operand 0, single buffered']
    %10 = vsyncpa [#allocation3], 0
    %11 = vsyncpa [#allocation4], 0
    // Predicated region
    $region2: #{tpu_custom_call.1} parent=1 // pred_check
      _
    $region3: #{tpu_custom_call.1} parent=1 // pred_check_branch
      %13 = sbr.rel (0) target = $region5
    $region4: #{tpu_custom_call.1} parent=1 // pred_region
      _
    $region5: #{tpu_custom_call.1} parent=1 // pred_fallthru
      _
    // Predicated region
    $region6: #{tpu_custom_call.1} parent=1 // pred_check
      _
    $region7: #{tpu_custom_call.1} parent=1 // pred_check_branch
      %15 = sbr.rel (0) target = $region9
    $region8: #{tpu_custom_call.1} parent=1 // pred_region
      _
    $region9: #{tpu_custom_call.1} parent=1 // pred_fallthru
      _
    // Predicated region
    $region10: #{tpu_custom_call.1} parent=1 // pred_check
      _
    $region11: #{tpu_custom_call.1} parent=1 // pred_check_branch
      %17 = sbr.rel (0) target = $region13
    $region12: #{tpu_custom_call.1} parent=1 // pred_region
      %s19 = ssub.s32 16, 16
      %20 = vsyncadd [#allocation3], %s19
      %s22 = sshll.u32 [#allocation2], 4
      %s23 = int_to_ptr.vmem [resolvable:$true] %s22
      %25 = dma.hbm_to_vmem [thread:$0]  %s2, 16, %s23, [#allocation3]
    $region13: #{tpu_custom_call.1} parent=1 // pred_fallthru
      _
    // Predicated region
    $region14: #{tpu_custom_call.1} parent=1 // pred_check
      _
    $region15: #{tpu_custom_call.1} parent=1 // pred_check_branch
      %27 = sbr.rel (0) target = $region17
    $region16: #{tpu_custom_call.1} parent=1 // pred_region
      _
    $region17: #{tpu_custom_call.1} parent=1 // pred_fallthru
      _
    // Predicated region
    $region18: #{tpu_custom_call.1} parent=1 // pred_check
      _
    $region19: #{tpu_custom_call.1} parent=1 // pred_check_branch
      %29 = sbr.rel (0) target = $region21
    $region20: #{tpu_custom_call.1} parent=1 // pred_region
      _
    $region21: #{tpu_custom_call.1} parent=1 // pred_fallthru
      _
    // Predicated region
    $region22: #{tpu_custom_call.1} parent=1 // pred_check
      _
    $region23: #{tpu_custom_call.1} parent=1 // pred_check_branch
      %31 = sbr.rel (0) target = $region25
    $region24: #{tpu_custom_call.1} parent=1 // pred_region
      %32 = dma.done [#allocation3], 16
    $region25: #{tpu_custom_call.1} parent=1 // pred_fallthru
      _
    %v34 = vld [vmem:[%s0] sm:$0x1]
    %v35 = vld [vmem:[%s1] sm:$0x1]
    %v36 = vld [vmem:[#allocation2] sm:$0x1]
    %v37 = vld [vmem:[%s3] sm:$0x3]
    %v38 = vld [vmem:[%s4] sm:$0xff]
    %v40 = vcombine.high %v38, %v38
    %v42 = vpack.c.bf16 %v38, %v38
    %v43 = vpack.c.bf16 %v40, %v40
    %vm44 = vcmask 31744
    %v46 = vsel %vm44, %v34, 0
    %vm48 = vcmask 1041408
    %v50 = vsel %vm48, %v42, 0
    %v53 = vsel %vm48, %v43, 0
    %55 = vmatprep.subr.bf16.mxu0 %v53
    %56 = vmatpush1.bf16.msra.mxu0 %v50
    %57 = vmatprep.subr.bf16.mxu0 0
    %58 = vmatpush1.bf16.msra.mxu0 0
    %59 = vmatprep.subr.bf16.mxu0 0
    %60 = vmatpush1.bf16.msra.mxu0 0
    %61 = vmatprep.subr.bf16.mxu0 0
    %62 = vmatpush1.bf16.msra.mxu0 0
    %63 = vmatprep.subr.bf16.mxu0 0
    %64 = vmatpush1.bf16.msra.mxu0 0
    %65 = vmatprep.subr.bf16.mxu0 0
    %66 = vmatpush1.bf16.msra.mxu0 0
    %67 = vmatprep.subr.bf16.mxu0 0
    %68 = vmatpush1.bf16.msra.mxu0 0
    %69 = vmatprep.subr.bf16.mxu0 0
    %70 = vmatpush1.bf16.msra.mxu0 0
    %71 = vmatprep.subr.bf16.mxu0 0
    %72 = vmatpush1.bf16.msra.mxu0 0
    %73 = vmatprep.subr.bf16.mxu0 0
    %74 = vmatpush1.bf16.msra.mxu0 0
    %75 = vmatprep.subr.bf16.mxu0 0
    %76 = vmatpush1.bf16.msra.mxu0 0
    %77 = vmatprep.subr.bf16.mxu0 0
    %78 = vmatpush1.bf16.msra.mxu0 0
    %79 = vmatprep.subr.bf16.mxu0 0
    %80 = vmatpush1.bf16.msra.mxu0 0
    %81 = vmatprep.subr.bf16.mxu0 0
    %82 = vmatpush1.bf16.msra.mxu0 0
    %83 = vmatprep.subr.bf16.mxu0 0
    %84 = vmatpush1.bf16.msra.mxu0 0
    %85 = vmatprep.subr.bf16.mxu0 0
    %86 = vmatpush1.bf16.msra.mxu0 0
    %87 = vmatprep.mubr.bf16.mxu0 0
    %88 = vmatmul.mubr.bf16.gmra.mrb[0].mxu0 %v46
    %v89 = vpop.f32.mrb[0].mxu0
    %v90 = vadd.f32 0.0, %v89
    %v91 = vpop.f32.mrb[0].mxu0
    %v92 = vadd.f32 0.0, %v91
    %v93 = vpop.f32.mrb[0].mxu0
    %v94 = vpop.f32.mrb[0].mxu0
    %95 = vdwg.mxu0
    %v97 = vsel %vm44, %v35, 0
    %99 = vmatprep.subr.bf16.mxu0 %v53
    %100 = vmatpush1.bf16.msra.mxu0 %v50
    %101 = vmatprep.subr.bf16.mxu0 0
    %102 = vmatpush1.bf16.msra.mxu0 0
    %103 = vmatprep.subr.bf16.mxu0 0
    %104 = vmatpush1.bf16.msra.mxu0 0
    %105 = vmatprep.subr.bf16.mxu0 0
    %106 = vmatpush1.bf16.msra.mxu0 0
    %107 = vmatprep.subr.bf16.mxu0 0
    %108 = vmatpush1.bf16.msra.mxu0 0
    %109 = vmatprep.subr.bf16.mxu0 0
    %110 = vmatpush1.bf16.msra.mxu0 0
    %111 = vmatprep.subr.bf16.mxu0 0
    %112 = vmatpush1.bf16.msra.mxu0 0
    %113 = vmatprep.subr.bf16.mxu0 0
    %114 = vmatpush1.bf16.msra.mxu0 0
    %115 = vmatprep.subr.bf16.mxu0 0
    %116 = vmatpush1.bf16.msra.mxu0 0
    %117 = vmatprep.subr.bf16.mxu0 0
    %118 = vmatpush1.bf16.msra.mxu0 0
    %119 = vmatprep.subr.bf16.mxu0 0
    %120 = vmatpush1.bf16.msra.mxu0 0
    %121 = vmatprep.subr.bf16.mxu0 0
    %122 = vmatpush1.bf16.msra.mxu0 0
    %123 = vmatprep.subr.bf16.mxu0 0
    %124 = vmatpush1.bf16.msra.mxu0 0
    %125 = vmatprep.subr.bf16.mxu0 0
    %126 = vmatpush1.bf16.msra.mxu0 0
    %127 = vmatprep.subr.bf16.mxu0 0
    %128 = vmatpush1.bf16.msra.mxu0 0
    %129 = vmatprep.subr.bf16.mxu0 0
    %130 = vmatpush1.bf16.msra.mxu0 0
    %131 = vmatprep.mubr.bf16.mxu0 0
    %132 = vmatmul.mubr.bf16.gmra.mrb[0].mxu0 %v97
    %v133 = vpop.f32.mrb[0].mxu0
    %v134 = vadd.f32 0.0, %v133
    %v135 = vpop.f32.mrb[0].mxu0
    %v136 = vadd.f32 0.0, %v135
    %v137 = vpop.f32.mrb[0].mxu0
    %v138 = vpop.f32.mrb[0].mxu0
    %139 = vdwg.mxu0
    %v141 = vsel %vm44, %v36, 0
    %143 = vmatprep.subr.bf16.mxu0 %v53
    %144 = vmatpush1.bf16.msra.mxu0 %v50
    %145 = vmatprep.subr.bf16.mxu0 0
    %146 = vmatpush1.bf16.msra.mxu0 0
    %147 = vmatprep.subr.bf16.mxu0 0
    %148 = vmatpush1.bf16.msra.mxu0 0
    %149 = vmatprep.subr.bf16.mxu0 0
    %150 = vmatpush1.bf16.msra.mxu0 0
    %151 = vmatprep.subr.bf16.mxu0 0
    %152 = vmatpush1.bf16.msra.mxu0 0
    %153 = vmatprep.subr.bf16.mxu0 0
    %154 = vmatpush1.bf16.msra.mxu0 0
    %155 = vmatprep.subr.bf16.mxu0 0
    %156 = vmatpush1.bf16.msra.mxu0 0
    %157 = vmatprep.subr.bf16.mxu0 0
    %158 = vmatpush1.bf16.msra.mxu0 0
    %159 = vmatprep.subr.bf16.mxu0 0
    %160 = vmatpush1.bf16.msra.mxu0 0
    %161 = vmatprep.subr.bf16.mxu0 0
    %162 = vmatpush1.bf16.msra.mxu0 0
    %163 = vmatprep.subr.bf16.mxu0 0
    %164 = vmatpush1.bf16.msra.mxu0 0
    %165 = vmatprep.subr.bf16.mxu0 0
    %166 = vmatpush1.bf16.msra.mxu0 0
    %167 = vmatprep.subr.bf16.mxu0 0
    %168 = vmatpush1.bf16.msra.mxu0 0
    %169 = vmatprep.subr.bf16.mxu0 0
    %170 = vmatpush1.bf16.msra.mxu0 0
    %171 = vmatprep.subr.bf16.mxu0 0
    %172 = vmatpush1.bf16.msra.mxu0 0
    %173 = vmatprep.subr.bf16.mxu0 0
    %174 = vmatpush1.bf16.msra.mxu0 0
    %175 = vmatprep.mubr.bf16.mxu0 0
    %176 = vmatmul.mubr.bf16.gmra.mrb[0].mxu0 %v141
    %v177 = vpop.f32.mrb[0].mxu0
    %v178 = vadd.f32 0.0, %v177
    %v179 = vpop.f32.mrb[0].mxu0
    %v180 = vadd.f32 0.0, %v179
    %v181 = vpop.f32.mrb[0].mxu0
    %v182 = vpop.f32.mrb[0].mxu0
    %183 = vdwg.mxu0
    %v184 = vpack.c.bf16 %v90, %v90
    %v185 = vpack.c.bf16 %v92, %v92
    %v186 = vpack.c.bf16 %v134, %v134
    %v187 = vpack.c.bf16 %v136, %v136
    %188 = vxpose.xlu0.c.b16.start [1/8] %v187, 128
    %189 = vxpose.xlu0.c.b16.cont [2/8] 0, 128
    %190 = vxpose.xlu0.c.b16.cont [3/8] 0, 128
    %191 = vxpose.xlu0.c.b16.cont [4/8] 0, 128
    %192 = vxpose.xlu0.c.b16.cont [5/8] 0, 128
    %193 = vxpose.xlu0.c.b16.cont [6/8] 0, 128
    %194 = vxpose.xlu0.c.b16.cont [7/8] 0, 128
    %195 = vxpose.xlu0.c.b16.end [8/8] 0, 128
    %v196 = vpop.trf.xlu0
    %v197 = vpop.trf.xlu0
    %v198 = vpop.trf.xlu0
    %v199 = vpop.trf.xlu0
    %v200 = vpop.trf.xlu0
    %v201 = vpop.trf.xlu0
    %v202 = vpop.trf.xlu0
    %v203 = vpop.trf.xlu0
    %vm204 = vcmask 15360
    %v206 = vsel %vm204, %v196, 0
    %v209 = vsel %vm204, %v197, 0
    %v212 = vsel %vm204, %v198, 0
    %v215 = vsel %vm204, %v199, 0
    %v218 = vsel %vm204, %v200, 0
    %v221 = vsel %vm204, %v201, 0
    %v224 = vsel %vm204, %v202, 0
    %v227 = vsel %vm204, %v203, 0
    %vm229 = vcmask 1040384
    %v231 = vsel %vm229, %v185, 0
    %233 = vmatprep.subr.bf16.mxu0 0
    %234 = vmatpush1.bf16.msra.mxu0 %v231
    %235 = vmatprep.subr.bf16.mxu0 0
    %236 = vmatpush1.bf16.msra.mxu0 0
    %237 = vmatprep.subr.bf16.mxu0 0
    %238 = vmatpush1.bf16.msra.mxu0 0
    %239 = vmatprep.subr.bf16.mxu0 0
    %240 = vmatpush1.bf16.msra.mxu0 0
    %241 = vmatprep.subr.bf16.mxu0 0
    %242 = vmatpush1.bf16.msra.mxu0 0
    %243 = vmatprep.subr.bf16.mxu0 0
    %244 = vmatpush1.bf16.msra.mxu0 0
    %245 = vmatprep.subr.bf16.mxu0 0
    %246 = vmatpush1.bf16.msra.mxu0 0
    %247 = vmatprep.subr.bf16.mxu0 0
    %248 = vmatpush1.bf16.msra.mxu0 0
    %249 = vmatprep.subr.bf16.mxu0 0
    %250 = vmatpush1.bf16.msra.mxu0 0
    %251 = vmatprep.subr.bf16.mxu0 0
    %252 = vmatpush1.bf16.msra.mxu0 0
    %253 = vmatprep.subr.bf16.mxu0 0
    %254 = vmatpush1.bf16.msra.mxu0 0
    %255 = vmatprep.subr.bf16.mxu0 0
    %256 = vmatpush1.bf16.msra.mxu0 0
    %257 = vmatprep.subr.bf16.mxu0 0
    %258 = vmatpush1.bf16.msra.mxu0 0
    %259 = vmatprep.subr.bf16.mxu0 0
    %260 = vmatpush1.bf16.msra.mxu0 0
    %261 = vmatprep.subr.bf16.mxu0 0
    %262 = vmatpush1.bf16.msra.mxu0 0
    %263 = vmatprep.subr.bf16.mxu0 0
    %264 = vmatpush1.bf16.msra.mxu0 0
    %265 = vmatprep.mubr.bf16.mxu0 0
    %266 = vmatmul.mubr.bf16.gmra.mrb[0].mxu0 %v206
    %v267 = vpop.f32.mrb[0].mxu0
    %v268 = vadd.f32 0.0, %v267
    %v269 = vpop.f32.mrb[0].mxu0
    %v270 = vpop.f32.mrb[0].mxu0
    %v271 = vadd.f32 0.0, %v270
    %v272 = vpop.f32.mrb[0].mxu0
    %273 = vmatprep.mubr.bf16.mxu0 0
    %274 = vmatmul.mubr.bf16.gmra.mrb[0].mxu0 %v209
    %v275 = vpop.f32.mrb[0].mxu0
    %v276 = vadd.f32 0.0, %v275
    %v277 = vpop.f32.mrb[0].mxu0
    %v278 = vpop.f32.mrb[0].mxu0
    %v279 = vadd.f32 0.0, %v278
    %v280 = vpop.f32.mrb[0].mxu0
    %281 = vmatprep.mubr.bf16.mxu0 0
    %282 = vmatmul.mubr.bf16.gmra.mrb[0].mxu0 %v212
    %v283 = vpop.f32.mrb[0].mxu0
    %v284 = vadd.f32 0.0, %v283
    %v285 = vpop.f32.mrb[0].mxu0
    %v286 = vpop.f32.mrb[0].mxu0
    %v287 = vadd.f32 0.0, %v286
    %v288 = vpop.f32.mrb[0].mxu0
    %289 = vmatprep.mubr.bf16.mxu0 0
    %290 = vmatmul.mubr.bf16.gmra.mrb[0].mxu0 %v215
    %v291 = vpop.f32.mrb[0].mxu0
    %v292 = vadd.f32 0.0, %v291
    %v293 = vpop.f32.mrb[0].mxu0
    %v294 = vpop.f32.mrb[0].mxu0
    %v295 = vadd.f32 0.0, %v294
    %v296 = vpop.f32.mrb[0].mxu0
    %297 = vmatprep.mubr.bf16.mxu0 0
    %298 = vmatmul.mubr.bf16.gmra.mrb[0].mxu0 %v218
    %v299 = vpop.f32.mrb[0].mxu0
    %v300 = vadd.f32 0.0, %v299
    %v301 = vpop.f32.mrb[0].mxu0
    %v302 = vpop.f32.mrb[0].mxu0
    %v303 = vadd.f32 0.0, %v302
    %v304 = vpop.f32.mrb[0].mxu0
    %305 = vmatprep.mubr.bf16.mxu0 0
    %306 = vmatmul.mubr.bf16.gmra.mrb[0].mxu0 %v221
    %v307 = vpop.f32.mrb[0].mxu0
    %v308 = vadd.f32 0.0, %v307
    %v309 = vpop.f32.mrb[0].mxu0
    %v310 = vpop.f32.mrb[0].mxu0
    %v311 = vadd.f32 0.0, %v310
    %v312 = vpop.f32.mrb[0].mxu0
    %313 = vmatprep.mubr.bf16.mxu0 0
    %314 = vmatmul.mubr.bf16.gmra.mrb[0].mxu0 %v224
    %v315 = vpop.f32.mrb[0].mxu0
    %v316 = vadd.f32 0.0, %v315
    %v317 = vpop.f32.mrb[0].mxu0
    %v318 = vpop.f32.mrb[0].mxu0
    %v319 = vadd.f32 0.0, %v318
    %v320 = vpop.f32.mrb[0].mxu0
    %321 = vmatprep.mubr.bf16.mxu0 0
    %322 = vmatmul.mubr.bf16.gmra.mrb[0].mxu0 %v227
    %v323 = vpop.f32.mrb[0].mxu0
    %v324 = vadd.f32 0.0, %v323
    %v325 = vpop.f32.mrb[0].mxu0
    %v326 = vpop.f32.mrb[0].mxu0
    %v327 = vadd.f32 0.0, %v326
    %v328 = vpop.f32.mrb[0].mxu0
    %329 = vdwg.mxu0
    %330 = vxpose.xlu0.c.b16.start [1/8] %v186, 128
    %331 = vxpose.xlu0.c.b16.cont [2/8] 0, 128
    %332 = vxpose.xlu0.c.b16.cont [3/8] 0, 128
    %333 = vxpose.xlu0.c.b16.cont [4/8] 0, 128
    %334 = vxpose.xlu0.c.b16.cont [5/8] 0, 128
    %335 = vxpose.xlu0.c.b16.cont [6/8] 0, 128
    %336 = vxpose.xlu0.c.b16.cont [7/8] 0, 128
    %337 = vxpose.xlu0.c.b16.end [8/8] 0, 128
    %v338 = vpop.trf.xlu0
    %v339 = vpop.trf.xlu0
    %v340 = vpop.trf.xlu0
    %v341 = vpop.trf.xlu0
    %v342 = vpop.trf.xlu0
    %v343 = vpop.trf.xlu0
    %v344 = vpop.trf.xlu0
    %v345 = vpop.trf.xlu0
    %v347 = vsel %vm204, %v338, 0
    %v350 = vsel %vm204, %v339, 0
    %v353 = vsel %vm204, %v340, 0
    %v356 = vsel %vm204, %v341, 0
    %v359 = vsel %vm204, %v342, 0
    %v362 = vsel %vm204, %v343, 0
    %v365 = vsel %vm204, %v344, 0
    %v368 = vsel %vm204, %v345, 0
    %v371 = vsel %vm229, %v184, 0
    %373 = vmatprep.subr.bf16.mxu0 0
    %374 = vmatpush1.bf16.msra.mxu0 %v371
    %375 = vmatprep.subr.bf16.mxu0 0
    %376 = vmatpush1.bf16.msra.mxu0 0
    %377 = vmatprep.subr.bf16.mxu0 0
    %378 = vmatpush1.bf16.msra.mxu0 0
    %379 = vmatprep.subr.bf16.mxu0 0
    %380 = vmatpush1.bf16.msra.mxu0 0
    %381 = vmatprep.subr.bf16.mxu0 0
    %382 = vmatpush1.bf16.msra.mxu0 0
    %383 = vmatprep.subr.bf16.mxu0 0
    %384 = vmatpush1.bf16.msra.mxu0 0
    %385 = vmatprep.subr.bf16.mxu0 0
    %386 = vmatpush1.bf16.msra.mxu0 0
    %387 = vmatprep.subr.bf16.mxu0 0
    %388 = vmatpush1.bf16.msra.mxu0 0
    %389 = vmatprep.subr.bf16.mxu0 0
    %390 = vmatpush1.bf16.msra.mxu0 0
    %391 = vmatprep.subr.bf16.mxu0 0
    %392 = vmatpush1.bf16.msra.mxu0 0
    %393 = vmatprep.subr.bf16.mxu0 0
    %394 = vmatpush1.bf16.msra.mxu0 0
    %395 = vmatprep.subr.bf16.mxu0 0
    %396 = vmatpush1.bf16.msra.mxu0 0
    %397 = vmatprep.subr.bf16.mxu0 0
    %398 = vmatpush1.bf16.msra.mxu0 0
    %399 = vmatprep.subr.bf16.mxu0 0
    %400 = vmatpush1.bf16.msra.mxu0 0
    %401 = vmatprep.subr.bf16.mxu0 0
    %402 = vmatpush1.bf16.msra.mxu0 0
    %403 = vmatprep.subr.bf16.mxu0 0
    %404 = vmatpush1.bf16.msra.mxu0 0
    %405 = vmatprep.mubr.bf16.mxu0 0
    %406 = vmatmul.mubr.bf16.gmra.mrb[0].mxu0 %v347
    %v407 = vpop.f32.mrb[0].mxu0
    %v408 = vadd.f32 %v268, %v407
    %v409 = vpop.f32.mrb[0].mxu0
    %v410 = vpop.f32.mrb[0].mxu0
    %v411 = vadd.f32 %v271, %v410
    %v412 = vpop.f32.mrb[0].mxu0
    %413 = vmatprep.mubr.bf16.mxu0 0
    %414 = vmatmul.mubr.bf16.gmra.mrb[0].mxu0 %v350
    %v415 = vpop.f32.mrb[0].mxu0
    %v416 = vadd.f32 %v276, %v415
    %v417 = vpop.f32.mrb[0].mxu0
    %v418 = vpop.f32.mrb[0].mxu0
    %v419 = vadd.f32 %v279, %v418
    %v420 = vpop.f32.mrb[0].mxu0
    %421 = vmatprep.mubr.bf16.mxu0 0
    %422 = vmatmul.mubr.bf16.gmra.mrb[0].mxu0 %v353
    %v423 = vpop.f32.mrb[0].mxu0
    %v424 = vadd.f32 %v284, %v423
    %v425 = vpop.f32.mrb[0].mxu0
    %v426 = vpop.f32.mrb[0].mxu0
    %v427 = vadd.f32 %v287, %v426
    %v428 = vpop.f32.mrb[0].mxu0
    %429 = vmatprep.mubr.bf16.mxu0 0
    %430 = vmatmul.mubr.bf16.gmra.mrb[0].mxu0 %v356
    %v431 = vpop.f32.mrb[0].mxu0
    %v432 = vadd.f32 %v292, %v431
    %v433 = vpop.f32.mrb[0].mxu0
    %v434 = vpop.f32.mrb[0].mxu0
    %v435 = vadd.f32 %v295, %v434
    %v436 = vpop.f32.mrb[0].mxu0
    %437 = vmatprep.mubr.bf16.mxu0 0
    %438 = vmatmul.mubr.bf16.gmra.mrb[0].mxu0 %v359
    %v439 = vpop.f32.mrb[0].mxu0
    %v440 = vadd.f32 %v300, %v439
    %v441 = vpop.f32.mrb[0].mxu0
    %v442 = vpop.f32.mrb[0].mxu0
    %v443 = vadd.f32 %v303, %v442
    %v444 = vpop.f32.mrb[0].mxu0
    %445 = vmatprep.mubr.bf16.mxu0 0
    %446 = vmatmul.mubr.bf16.gmra.mrb[0].mxu0 %v362
    %v447 = vpop.f32.mrb[0].mxu0
    %v448 = vadd.f32 %v308, %v447
    %v449 = vpop.f32.mrb[0].mxu0
    %v450 = vpop.f32.mrb[0].mxu0
    %v451 = vadd.f32 %v311, %v450
    %v452 = vpop.f32.mrb[0].mxu0
    %453 = vmatprep.mubr.bf16.mxu0 0
    %454 = vmatmul.mubr.bf16.gmra.mrb[0].mxu0 %v365
    %v455 = vpop.f32.mrb[0].mxu0
    %v456 = vadd.f32 %v316, %v455
    %v457 = vpop.f32.mrb[0].mxu0
    %v458 = vpop.f32.mrb[0].mxu0
    %v459 = vadd.f32 %v319, %v458
    %v460 = vpop.f32.mrb[0].mxu0
    %461 = vmatprep.mubr.bf16.mxu0 0
    %462 = vmatmul.mubr.bf16.gmra.mrb[0].mxu0 %v368
    %v463 = vpop.f32.mrb[0].mxu0
    %v464 = vadd.f32 %v324, %v463
    %v465 = vpop.f32.mrb[0].mxu0
    %v466 = vpop.f32.mrb[0].mxu0
    %v467 = vadd.f32 %v327, %v466
    %v468 = vpop.f32.mrb[0].mxu0
    %469 = vdwg.mxu0
    %v470 = vmax.f32 %v408, %v424
    %v471 = vmax.f32 %v411, %v427
    %v472 = vmax.f32 %v416, %v432
    %v473 = vmax.f32 %v419, %v435
    %v474 = vmax.f32 %v470, %v440
    %v475 = vmax.f32 %v471, %v443
    %v476 = vmax.f32 %v472, %v448
    %v477 = vmax.f32 %v473, %v451
    %v478 = vmax.f32 %v474, %v456
    %v479 = vmax.f32 %v475, %v459
    %v480 = vmax.f32 %v476, %v464
    %v481 = vmax.f32 %v477, %v467
    %v482 = vmax.f32 %v478, %v479
    %v483 = vmax.f32 %v480, %v481
    %v484 = vmax.f32 %v482, %v483
    %v485 = vrot.slane %v484, 4
    %v486 = vmax.f32 %v484, %v485
    %v487 = vrot.slane %v486, 2
    %v488 = vmax.f32 %v486, %v487
    %v489 = vrot.slane %v488, 1
    %v490 = vmax.f32 %v488, %v489
    %v491 = vsub.f32 %v408, %v490
    %v492 = vsub.f32 %v411, %v490
    %v493 = vsub.f32 %v416, %v490
    %v494 = vsub.f32 %v419, %v490
    %v495 = vsub.f32 %v424, %v490
    %v496 = vsub.f32 %v427, %v490
    %v497 = vsub.f32 %v432, %v490
    %v498 = vsub.f32 %v435, %v490
    %v499 = vsub.f32 %v440, %v490
    %v500 = vsub.f32 %v443, %v490
    %v501 = vsub.f32 %v448, %v490
    %v502 = vsub.f32 %v451, %v490
    %v503 = vsub.f32 %v456, %v490
    %v504 = vsub.f32 %v459, %v490
    %v505 = vsub.f32 %v464, %v490
    %v506 = vsub.f32 %v467, %v490
    %v507 = vmul.f32 %v491, 1.442695
    %v508 = vpow.pop %v507
    %v509 = vmul.f32 %v492, 1.442695
    %v510 = vpow.pop %v509
    %v511 = vmul.f32 %v493, 1.442695
    %v512 = vpow.pop %v511
    %v513 = vmul.f32 %v494, 1.442695
    %v514 = vpow.pop %v513
    %v515 = vmul.f32 %v495, 1.442695
    %v516 = vpow.pop %v515
    %v517 = vmul.f32 %v496, 1.442695
    %v518 = vpow.pop %v517
    %v519 = vmul.f32 %v497, 1.442695
    %v520 = vpow.pop %v519
    %v521 = vmul.f32 %v498, 1.442695
    %v522 = vpow.pop %v521
    %v523 = vmul.f32 %v499, 1.442695
    %v524 = vpow.pop %v523
    %v525 = vmul.f32 %v500, 1.442695
    %v526 = vpow.pop %v525
    %v527 = vmul.f32 %v501, 1.442695
    %v528 = vpow.pop %v527
    %v529 = vmul.f32 %v502, 1.442695
    %v530 = vpow.pop %v529
    %v531 = vmul.f32 %v503, 1.442695
    %v532 = vpow.pop %v531
    %v533 = vmul.f32 %v504, 1.442695
    %v534 = vpow.pop %v533
    %v535 = vmul.f32 %v505, 1.442695
    %v536 = vpow.pop %v535
    %v537 = vmul.f32 %v506, 1.442695
    %v538 = vpow.pop %v537
    %v539 = vadd.f32 %v508, %v510
    %v540 = vadd.f32 %v539, %v512
    %v541 = vadd.f32 %v540, %v514
    %v542 = vadd.f32 %v541, %v516
    %v543 = vadd.f32 %v542, %v518
    %v544 = vadd.f32 %v543, %v520
    %v545 = vadd.f32 %v544, %v522
    %v546 = vadd.f32 %v545, %v524
    %v547 = vadd.f32 %v546, %v526
    %v548 = vadd.f32 %v547, %v528
    %v549 = vadd.f32 %v548, %v530
    %v550 = vadd.f32 %v549, %v532
    %v551 = vadd.f32 %v550, %v534
    %v552 = vadd.f32 %v551, %v536
    %v553 = vadd.f32 %v552, %v538
    %v554 = vrot.slane %v553, 4
    %v555 = vadd.f32 %v553, %v554
    %v556 = vrot.slane %v555, 2
    %v557 = vadd.f32 %v555, %v556
    %v558 = vrot.slane %v557, 1
    %v559 = vadd.f32 %v557, %v558
    %v560 = vrcp.pop %v559
    %v561 = vpack.c.bf16 %v510, %v508
    %v562 = vpack.c.bf16 %v514, %v512
    %v563 = vpack.c.bf16 %v518, %v516
    %v564 = vpack.c.bf16 %v522, %v520
    %v565 = vpack.c.bf16 %v526, %v524
    %v566 = vpack.c.bf16 %v530, %v528
    %v567 = vpack.c.bf16 %v534, %v532
    %v568 = vpack.c.bf16 %v538, %v536
    %v569 = vmul.f32 %v178, %v560
    %v570 = vpack.c.bf16 %v569, %v569
    %v571 = vmul.f32 %v180, %v560
    %v572 = vpack.c.bf16 %v571, %v571
    %573 = vmatprep.subr.bf16.mxu0 0
    %574 = vmatpush1.bf16.xpose.msra.mxu0 %v561
    %575 = vmatprep.subr.bf16.mxu0 0
    %576 = vmatpush1.bf16.xpose.msra.mxu0 %v562
    %577 = vmatprep.subr.bf16.mxu0 0
    %578 = vmatpush1.bf16.xpose.msra.mxu0 %v563
    %579 = vmatprep.subr.bf16.mxu0 0
    %580 = vmatpush1.bf16.xpose.msra.mxu0 %v564
    %581 = vmatprep.subr.bf16.mxu0 0
    %582 = vmatpush1.bf16.xpose.msra.mxu0 %v565
    %583 = vmatprep.subr.bf16.mxu0 0
    %584 = vmatpush1.bf16.xpose.msra.mxu0 %v566
    %585 = vmatprep.subr.bf16.mxu0 0
    %586 = vmatpush1.bf16.xpose.msra.mxu0 %v567
    %587 = vmatprep.subr.bf16.mxu0 0
    %588 = vmatpush1.bf16.xpose.msra.mxu0 %v568
    %589 = vmatprep.subr.bf16.mxu0 0
    %590 = vmatpush1.bf16.xpose.msra.mxu0 0
    %591 = vmatprep.subr.bf16.mxu0 0
    %592 = vmatpush1.bf16.xpose.msra.mxu0 0
    %593 = vmatprep.subr.bf16.mxu0 0
    %594 = vmatpush1.bf16.xpose.msra.mxu0 0
    %595 = vmatprep.subr.bf16.mxu0 0
    %596 = vmatpush1.bf16.xpose.msra.mxu0 0
    %597 = vmatprep.subr.bf16.mxu0 0
    %598 = vmatpush1.bf16.xpose.msra.mxu0 0
    %599 = vmatprep.subr.bf16.mxu0 0
    %600 = vmatpush1.bf16.xpose.msra.mxu0 0
    %601 = vmatprep.subr.bf16.mxu0 0
    %602 = vmatpush1.bf16.xpose.msra.mxu0 0
    %603 = vmatprep.subr.bf16.mxu0 0
    %604 = vmatpush1.bf16.xpose.msra.mxu0 0
    %605 = vmatprep.mubr.bf16.mxu0 0
    %606 = vmatmul.mubr.bf16.gmra.mrb[0].mxu0 %v570
    %v607 = vpop.f32.mrb[0].mxu0
    %v608 = vadd.f32 0.0, %v607
    %v609 = vpop.f32.mrb[0].mxu0
    %v610 = vpop.f32.mrb[0].mxu0
    %v611 = vpop.f32.mrb[0].mxu0
    %612 = vdwg.mxu0
    %613 = vmatprep.subr.bf16.mxu0 0
    %614 = vmatpush1.bf16.xpose.msra.mxu0 %v561
    %615 = vmatprep.subr.bf16.mxu0 0
    %616 = vmatpush1.bf16.xpose.msra.mxu0 %v562
    %617 = vmatprep.subr.bf16.mxu0 0
    %618 = vmatpush1.bf16.xpose.msra.mxu0 %v563
    %619 = vmatprep.subr.bf16.mxu0 0
    %620 = vmatpush1.bf16.xpose.msra.mxu0 %v564
    %621 = vmatprep.subr.bf16.mxu0 0
    %622 = vmatpush1.bf16.xpose.msra.mxu0 %v565
    %623 = vmatprep.subr.bf16.mxu0 0
    %624 = vmatpush1.bf16.xpose.msra.mxu0 %v566
    %625 = vmatprep.subr.bf16.mxu0 0
    %626 = vmatpush1.bf16.xpose.msra.mxu0 %v567
    %627 = vmatprep.subr.bf16.mxu0 0
    %628 = vmatpush1.bf16.xpose.msra.mxu0 %v568
    %629 = vmatprep.subr.bf16.mxu0 0
    %630 = vmatpush1.bf16.xpose.msra.mxu0 0
    %631 = vmatprep.subr.bf16.mxu0 0
    %632 = vmatpush1.bf16.xpose.msra.mxu0 0
    %633 = vmatprep.subr.bf16.mxu0 0
    %634 = vmatpush1.bf16.xpose.msra.mxu0 0
    %635 = vmatprep.subr.bf16.mxu0 0
    %636 = vmatpush1.bf16.xpose.msra.mxu0 0
    %637 = vmatprep.subr.bf16.mxu0 0
    %638 = vmatpush1.bf16.xpose.msra.mxu0 0
    %639 = vmatprep.subr.bf16.mxu0 0
    %640 = vmatpush1.bf16.xpose.msra.mxu0 0
    %641 = vmatprep.subr.bf16.mxu0 0
    %642 = vmatpush1.bf16.xpose.msra.mxu0 0
    %643 = vmatprep.subr.bf16.mxu0 0
    %644 = vmatpush1.bf16.xpose.msra.mxu0 0
    %645 = vmatprep.mubr.bf16.mxu0 0
    %646 = vmatmul.mubr.bf16.gmra.mrb[0].mxu0 %v572
    %v647 = vpop.f32.mrb[0].mxu0
    %v648 = vadd.f32 0.0, %v647
    %v649 = vpop.f32.mrb[0].mxu0
    %v650 = vpop.f32.mrb[0].mxu0
    %v651 = vpop.f32.mrb[0].mxu0
    %652 = vdwg.mxu0
    %v653 = vpack.c.bf16 %v608, %v608
    %v654 = vpack.c.bf16 %v648, %v648
    %v656 = vsel %vm204, %v37, 0
    %v659 = vsel %vm229, %v653, 0
    %v662 = vsel %vm229, %v654, 0
    %664 = vmatprep.subr.bf16.mxu0 %v662
    %665 = vmatpush1.bf16.msra.mxu0 %v659
    %666 = vmatprep.subr.bf16.mxu0 0
    %667 = vmatpush1.bf16.msra.mxu0 0
    %668 = vmatprep.subr.bf16.mxu0 0
    %669 = vmatpush1.bf16.msra.mxu0 0
    %670 = vmatprep.subr.bf16.mxu0 0
    %671 = vmatpush1.bf16.msra.mxu0 0
    %672 = vmatprep.subr.bf16.mxu0 0
    %673 = vmatpush1.bf16.msra.mxu0 0
    %674 = vmatprep.subr.bf16.mxu0 0
    %675 = vmatpush1.bf16.msra.mxu0 0
    %676 = vmatprep.subr.bf16.mxu0 0
    %677 = vmatpush1.bf16.msra.mxu0 0
    %678 = vmatprep.subr.bf16.mxu0 0
    %679 = vmatpush1.bf16.msra.mxu0 0
    %680 = vmatprep.subr.bf16.mxu0 0
    %681 = vmatpush1.bf16.msra.mxu0 0
    %682 = vmatprep.subr.bf16.mxu0 0
    %683 = vmatpush1.bf16.msra.mxu0 0
    %684 = vmatprep.subr.bf16.mxu0 0
    %685 = vmatpush1.bf16.msra.mxu0 0
    %686 = vmatprep.subr.bf16.mxu0 0
    %687 = vmatpush1.bf16.msra.mxu0 0
    %688 = vmatprep.subr.bf16.mxu0 0
    %689 = vmatpush1.bf16.msra.mxu0 0
    %690 = vmatprep.subr.bf16.mxu0 0
    %691 = vmatpush1.bf16.msra.mxu0 0
    %692 = vmatprep.subr.bf16.mxu0 0
    %693 = vmatpush1.bf16.msra.mxu0 0
    %694 = vmatprep.subr.bf16.mxu0 0
    %695 = vmatpush1.bf16.msra.mxu0 0
    %696 = vmatprep.mubr.bf16.mxu0 0
    %697 = vmatmul.mubr.bf16.gmra.mrb[0].mxu0 %v656
    %v698 = vpop.f32.mrb[0].mxu0
    %v699 = vadd.f32 %v38, %v698
    %v700 = vpop.f32.mrb[0].mxu0
    %v701 = vadd.f32 %v40, %v700
    %v702 = vpop.f32.mrb[0].mxu0
    %v703 = vpop.f32.mrb[0].mxu0
    %704 = vdwg.mxu0
    %v707 = vcombine.low %v699, %v701
    %709 = vst [vmem:[#allocation5] sm:$0xff] %v707
    %s710 = scalar_lea.vmem %s4, 8
    %v711 = vld [vmem:[%s710] sm:$0xff]
    %v713 = vcombine.high %v711, %v711
    %v715 = vpack.c.bf16 %v711, %v711
    %v716 = vpack.c.bf16 %v713, %v713
    %v718 = vsel %vm48, %v715, 0
    %v721 = vsel %vm48, %v716, 0
    %723 = vmatprep.subr.bf16.mxu0 %v721
    %724 = vmatpush1.bf16.msra.mxu0 %v718
    %725 = vmatprep.subr.bf16.mxu0 0
    %726 = vmatpush1.bf16.msra.mxu0 0
    %727 = vmatprep.subr.bf16.mxu0 0
    %728 = vmatpush1.bf16.msra.mxu0 0
    %729 = vmatprep.subr.bf16.mxu0 0
    %730 = vmatpush1.bf16.msra.mxu0 0
    %731 = vmatprep.subr.bf16.mxu0 0
    %732 = vmatpush1.bf16.msra.mxu0 0
    %733 = vmatprep.subr.bf16.mxu0 0
    %734 = vmatpush1.bf16.msra.mxu0 0
    %735 = vmatprep.subr.bf16.mxu0 0
    %736 = vmatpush1.bf16.msra.mxu0 0
    %737 = vmatprep.subr.bf16.mxu0 0
    %738 = vmatpush1.bf16.msra.mxu0 0
    %739 = vmatprep.subr.bf16.mxu0 0
    %740 = vmatpush1.bf16.msra.mxu0 0
    %741 = vmatprep.subr.bf16.mxu0 0
    %742 = vmatpush1.bf16.msra.mxu0 0
    %743 = vmatprep.subr.bf16.mxu0 0
    %744 = vmatpush1.bf16.msra.mxu0 0
    %745 = vmatprep.subr.bf16.mxu0 0
    %746 = vmatpush1.bf16.msra.mxu0 0
    %747 = vmatprep.subr.bf16.mxu0 0
    %748 = vmatpush1.bf16.msra.mxu0 0
    %749 = vmatprep.subr.bf16.mxu0 0
    %750 = vmatpush1.bf16.msra.mxu0 0
    %751 = vmatprep.subr.bf16.mxu0 0
    %752 = vmatpush1.bf16.msra.mxu0 0
    %753 = vmatprep.subr.bf16.mxu0 0
    %754 = vmatpush1.bf16.msra.mxu0 0
    %755 = vmatprep.mubr.bf16.mxu0 0
    %756 = vmatmul.mubr.bf16.gmra.mrb[0].mxu0 %v46
    %v757 = vpop.f32.mrb[0].mxu0
    %v758 = vadd.f32 0.0, %v757
    %v759 = vpop.f32.mrb[0].mxu0
    %v760 = vadd.f32 0.0, %v759
    %v761 = vpop.f32.mrb[0].mxu0
    %v762 = vpop.f32.mrb[0].mxu0
    %763 = vdwg.mxu0
    %764 = vmatprep.subr.bf16.mxu0 %v721
    %765 = vmatpush1.bf16.msra.mxu0 %v718
    %766 = vmatprep.subr.bf16.mxu0 0
    %767 = vmatpush1.bf16.msra.mxu0 0
    %768 = vmatprep.subr.bf16.mxu0 0
    %769 = vmatpush1.bf16.msra.mxu0 0
    %770 = vmatprep.subr.bf16.mxu0 0
    %771 = vmatpush1.bf16.msra.mxu0 0
    %772 = vmatprep.subr.bf16.mxu0 0
    %773 = vmatpush1.bf16.msra.mxu0 0
    %774 = vmatprep.subr.bf16.mxu0 0
    %775 = vmatpush1.bf16.msra.mxu0 0
    %776 = vmatprep.subr.bf16.mxu0 0
    %777 = vmatpush1.bf16.msra.mxu0 0
    %778 = vmatprep.subr.bf16.mxu0 0
    %779 = vmatpush1.bf16.msra.mxu0 0
    %780 = vmatprep.subr.bf16.mxu0 0
    %781 = vmatpush1.bf16.msra.mxu0 0
    %782 = vmatprep.subr.bf16.mxu0 0
    %783 = vmatpush1.bf16.msra.mxu0 0
    %784 = vmatprep.subr.bf16.mxu0 0
    %785 = vmatpush1.bf16.msra.mxu0 0
    %786 = vmatprep.subr.bf16.mxu0 0
    %787 = vmatpush1.bf16.msra.mxu0 0
    %788 = vmatprep.subr.bf16.mxu0 0
    %789 = vmatpush1.bf16.msra.mxu0 0
    %790 = vmatprep.subr.bf16.mxu0 0
    %791 = vmatpush1.bf16.msra.mxu0 0
    %792 = vmatprep.subr.bf16.mxu0 0
    %793 = vmatpush1.bf16.msra.mxu0 0
    %794 = vmatprep.subr.bf16.mxu0 0
    %795 = vmatpush1.bf16.msra.mxu0 0
    %796 = vmatprep.mubr.bf16.mxu0 0
    %797 = vmatmul.mubr.bf16.gmra.mrb[0].mxu0 %v97
    %v798 = vpop.f32.mrb[0].mxu0
    %v799 = vadd.f32 0.0, %v798
    %v800 = vpop.f32.mrb[0].mxu0
    %v801 = vadd.f32 0.0, %v800
    %v802 = vpop.f32.mrb[0].mxu0
    %v803 = vpop.f32.mrb[0].mxu0
    %804 = vdwg.mxu0
    %805 = vmatprep.subr.bf16.mxu0 %v721
    %806 = vmatpush1.bf16.msra.mxu0 %v718
    %807 = vmatprep.subr.bf16.mxu0 0
    %808 = vmatpush1.bf16.msra.mxu0 0
    %809 = vmatprep.subr.bf16.mxu0 0
    %810 = vmatpush1.bf16.msra.mxu0 0
    %811 = vmatprep.subr.bf16.mxu0 0
    %812 = vmatpush1.bf16.msra.mxu0 0
    %813 = vmatprep.subr.bf16.mxu0 0
    %814 = vmatpush1.bf16.msra.mxu0 0
    %815 = vmatprep.subr.bf16.mxu0 0
    %816 = vmatpush1.bf16.msra.mxu0 0
    %817 = vmatprep.subr.bf16.mxu0 0
    %818 = vmatpush1.bf16.msra.mxu0 0
    %819 = vmatprep.subr.bf16.mxu0 0
    %820 = vmatpush1.bf16.msra.mxu0 0
    %821 = vmatprep.subr.bf16.mxu0 0
    %822 = vmatpush1.bf16.msra.mxu0 0
    %823 = vmatprep.subr.bf16.mxu0 0
    %824 = vmatpush1.bf16.msra.mxu0 0
    %825 = vmatprep.subr.bf16.mxu0 0
    %826 = vmatpush1.bf16.msra.mxu0 0
    %827 = vmatprep.subr.bf16.mxu0 0
    %828 = vmatpush1.bf16.msra.mxu0 0
    %829 = vmatprep.subr.bf16.mxu0 0
    %830 = vmatpush1.bf16.msra.mxu0 0
    %831 = vmatprep.subr.bf16.mxu0 0
    %832 = vmatpush1.bf16.msra.mxu0 0
    %833 = vmatprep.subr.bf16.mxu0 0
    %834 = vmatpush1.bf16.msra.mxu0 0
    %835 = vmatprep.subr.bf16.mxu0 0
    %836 = vmatpush1.bf16.msra.mxu0 0
    %837 = vmatprep.mubr.bf16.mxu0 0
    %838 = vmatmul.mubr.bf16.gmra.mrb[0].mxu0 %v141
    %v839 = vpop.f32.mrb[0].mxu0
    %v840 = vadd.f32 0.0, %v839
    %v841 = vpop.f32.mrb[0].mxu0
    %v842 = vadd.f32 0.0, %v841
    %v843 = vpop.f32.mrb[0].mxu0
    %v844 = vpop.f32.mrb[0].mxu0
    %845 = vdwg.mxu0
    %v846 = vpack.c.bf16 %v758, %v758
    %v847 = vpack.c.bf16 %v760, %v760
    %v848 = vpack.c.bf16 %v799, %v799
    %v849 = vpack.c.bf16 %v801, %v801
    %850 = vxpose.xlu0.c.b16.start [1/8] %v849, 128
    %851 = vxpose.xlu0.c.b16.cont [2/8] 0, 128
    %852 = vxpose.xlu0.c.b16.cont [3/8] 0, 128
    %853 = vxpose.xlu0.c.b16.cont [4/8] 0, 128
    %854 = vxpose.xlu0.c.b16.cont [5/8] 0, 128
    %855 = vxpose.xlu0.c.b16.cont [6/8] 0, 128
    %856 = vxpose.xlu0.c.b16.cont [7/8] 0, 128
    %857 = vxpose.xlu0.c.b16.end [8/8] 0, 128
    %v858 = vpop.trf.xlu0
    %v859 = vpop.trf.xlu0
    %v860 = vpop.trf.xlu0
    %v861 = vpop.trf.xlu0
    %v862 = vpop.trf.xlu0
    %v863 = vpop.trf.xlu0
    %v864 = vpop.trf.xlu0
    %v865 = vpop.trf.xlu0
    %v867 = vsel %vm204, %v858, 0
    %v870 = vsel %vm204, %v859, 0
    %v873 = vsel %vm204, %v860, 0
    %v876 = vsel %vm204, %v861, 0
    %v879 = vsel %vm204, %v862, 0
    %v882 = vsel %vm204, %v863, 0
    %v885 = vsel %vm204, %v864, 0
    %v888 = vsel %vm204, %v865, 0
    %v891 = vsel %vm229, %v847, 0
    %893 = vmatprep.subr.bf16.mxu0 0
    %894 = vmatpush1.bf16.msra.mxu0 %v891
    %895 = vmatprep.subr.bf16.mxu0 0
    %896 = vmatpush1.bf16.msra.mxu0 0
    %897 = vmatprep.subr.bf16.mxu0 0
    %898 = vmatpush1.bf16.msra.mxu0 0
    %899 = vmatprep.subr.bf16.mxu0 0
    %900 = vmatpush1.bf16.msra.mxu0 0
    %901 = vmatprep.subr.bf16.mxu0 0
    %902 = vmatpush1.bf16.msra.mxu0 0
    %903 = vmatprep.subr.bf16.mxu0 0
    %904 = vmatpush1.bf16.msra.mxu0 0
    %905 = vmatprep.subr.bf16.mxu0 0
    %906 = vmatpush1.bf16.msra.mxu0 0
    %907 = vmatprep.subr.bf16.mxu0 0
    %908 = vmatpush1.bf16.msra.mxu0 0
    %909 = vmatprep.subr.bf16.mxu0 0
    %910 = vmatpush1.bf16.msra.mxu0 0
    %911 = vmatprep.subr.bf16.mxu0 0
    %912 = vmatpush1.bf16.msra.mxu0 0
    %913 = vmatprep.subr.bf16.mxu0 0
    %914 = vmatpush1.bf16.msra.mxu0 0
    %915 = vmatprep.subr.bf16.mxu0 0
    %916 = vmatpush1.bf16.msra.mxu0 0
    %917 = vmatprep.subr.bf16.mxu0 0
    %918 = vmatpush1.bf16.msra.mxu0 0
    %919 = vmatprep.subr.bf16.mxu0 0
    %920 = vmatpush1.bf16.msra.mxu0 0
    %921 = vmatprep.subr.bf16.mxu0 0
    %922 = vmatpush1.bf16.msra.mxu0 0
    %923 = vmatprep.subr.bf16.mxu0 0
    %924 = vmatpush1.bf16.msra.mxu0 0
    %925 = vmatprep.mubr.bf16.mxu0 0
    %926 = vmatmul.mubr.bf16.gmra.mrb[0].mxu0 %v867
    %v927 = vpop.f32.mrb[0].mxu0
    %v928 = vadd.f32 0.0, %v927
    %v929 = vpop.f32.mrb[0].mxu0
    %v930 = vpop.f32.mrb[0].mxu0
    %v931 = vadd.f32 0.0, %v930
    %v932 = vpop.f32.mrb[0].mxu0
    %933 = vmatprep.mubr.bf16.mxu0 0
    %934 = vmatmul.mubr.bf16.gmra.mrb[0].mxu0 %v870
    %v935 = vpop.f32.mrb[0].mxu0
    %v936 = vadd.f32 0.0, %v935
    %v937 = vpop.f32.mrb[0].mxu0
    %v938 = vpop.f32.mrb[0].mxu0
    %v939 = vadd.f32 0.0, %v938
    %v940 = vpop.f32.mrb[0].mxu0
    %941 = vmatprep.mubr.bf16.mxu0 0
    %942 = vmatmul.mubr.bf16.gmra.mrb[0].mxu0 %v873
    %v943 = vpop.f32.mrb[0].mxu0
    %v944 = vadd.f32 0.0, %v943
    %v945 = vpop.f32.mrb[0].mxu0
    %v946 = vpop.f32.mrb[0].mxu0
    %v947 = vadd.f32 0.0, %v946
    %v948 = vpop.f32.mrb[0].mxu0
    %949 = vmatprep.mubr.bf16.mxu0 0
    %950 = vmatmul.mubr.bf16.gmra.mrb[0].mxu0 %v876
    %v951 = vpop.f32.mrb[0].mxu0
    %v952 = vadd.f32 0.0, %v951
    %v953 = vpop.f32.mrb[0].mxu0
    %v954 = vpop.f32.mrb[0].mxu0
    %v955 = vadd.f32 0.0, %v954
    %v956 = vpop.f32.mrb[0].mxu0
    %957 = vmatprep.mubr.bf16.mxu0 0
    %958 = vmatmul.mubr.bf16.gmra.mrb[0].mxu0 %v879
    %v959 = vpop.f32.mrb[0].mxu0
    %v960 = vadd.f32 0.0, %v959
    %v961 = vpop.f32.mrb[0].mxu0
    %v962 = vpop.f32.mrb[0].mxu0
    %v963 = vadd.f32 0.0, %v962
    %v964 = vpop.f32.mrb[0].mxu0
    %965 = vmatprep.mubr.bf16.mxu0 0
    %966 = vmatmul.mubr.bf16.gmra.mrb[0].mxu0 %v882
    %v967 = vpop.f32.mrb[0].mxu0
    %v968 = vadd.f32 0.0, %v967
    %v969 = vpop.f32.mrb[0].mxu0
    %v970 = vpop.f32.mrb[0].mxu0
    %v971 = vadd.f32 0.0, %v970
    %v972 = vpop.f32.mrb[0].mxu0
    %973 = vmatprep.mubr.bf16.mxu0 0
    %974 = vmatmul.mubr.bf16.gmra.mrb[0].mxu0 %v885
    %v975 = vpop.f32.mrb[0].mxu0
    %v976 = vadd.f32 0.0, %v975
    %v977 = vpop.f32.mrb[0].mxu0
    %v978 = vpop.f32.mrb[0].mxu0
    %v979 = vadd.f32 0.0, %v978
    %v980 = vpop.f32.mrb[0].mxu0
    %981 = vmatprep.mubr.bf16.mxu0 0
    %982 = vmatmul.mubr.bf16.gmra.mrb[0].mxu0 %v888
    %v983 = vpop.f32.mrb[0].mxu0
    %v984 = vadd.f32 0.0, %v983
    %v985 = vpop.f32.mrb[0].mxu0
    %v986 = vpop.f32.mrb[0].mxu0
    %v987 = vadd.f32 0.0, %v986
    %v988 = vpop.f32.mrb[0].mxu0
    %989 = vdwg.mxu0
    %990 = vxpose.xlu0.c.b16.start [1/8] %v848, 128
    %991 = vxpose.xlu0.c.b16.cont [2/8] 0, 128
    %992 = vxpose.xlu0.c.b16.cont [3/8] 0, 128
    %993 = vxpose.xlu0.c.b16.cont [4/8] 0, 128
    %994 = vxpose.xlu0.c.b16.cont [5/8] 0, 128
    %995 = vxpose.xlu0.c.b16.cont [6/8] 0, 128
    %996 = vxpose.xlu0.c.b16.cont [7/8] 0, 128
    %997 = vxpose.xlu0.c.b16.end [8/8] 0, 128
    %v998 = vpop.trf.xlu0
    %v999 = vpop.trf.xlu0
    %v1000 = vpop.trf.xlu0
    %v1001 = vpop.trf.xlu0
    %v1002 = vpop.trf.xlu0
    %v1003 = vpop.trf.xlu0
    %v1004 = vpop.trf.xlu0
    %v1005 = vpop.trf.xlu0
    %v1007 = vsel %vm204, %v998, 0
    %v1010 = vsel %vm204, %v999, 0
    %v1013 = vsel %vm204, %v1000, 0
    %v1016 = vsel %vm204, %v1001, 0
    %v1019 = vsel %vm204, %v1002, 0
    %v1022 = vsel %vm204, %v1003, 0
    %v1025 = vsel %vm204, %v1004, 0
    %v1028 = vsel %vm204, %v1005, 0
    %v1031 = vsel %vm229, %v846, 0
    %1033 = vmatprep.subr.bf16.mxu0 0
    %1034 = vmatpush1.bf16.msra.mxu0 %v1031
    %1035 = vmatprep.subr.bf16.mxu0 0
    %1036 = vmatpush1.bf16.msra.mxu0 0
    %1037 = vmatprep.subr.bf16.mxu0 0
    %1038 = vmatpush1.bf16.msra.mxu0 0
    %1039 = vmatprep.subr.bf16.mxu0 0
    %1040 = vmatpush1.bf16.msra.mxu0 0
    %1041 = vmatprep.subr.bf16.mxu0 0
    %1042 = vmatpush1.bf16.msra.mxu0 0
    %1043 = vmatprep.subr.bf16.mxu0 0
    %1044 = vmatpush1.bf16.msra.mxu0 0
    %1045 = vmatprep.subr.bf16.mxu0 0
    %1046 = vmatpush1.bf16.msra.mxu0 0
    %1047 = vmatprep.subr.bf16.mxu0 0
    %1048 = vmatpush1.bf16.msra.mxu0 0
    %1049 = vmatprep.subr.bf16.mxu0 0
    %1050 = vmatpush1.bf16.msra.mxu0 0
    %1051 = vmatprep.subr.bf16.mxu0 0
    %1052 = vmatpush1.bf16.msra.mxu0 0
    %1053 = vmatprep.subr.bf16.mxu0 0
    %1054 = vmatpush1.bf16.msra.mxu0 0
    %1055 = vmatprep.subr.bf16.mxu0 0
    %1056 = vmatpush1.bf16.msra.mxu0 0
    %1057 = vmatprep.subr.bf16.mxu0 0
    %1058 = vmatpush1.bf16.msra.mxu0 0
    %1059 = vmatprep.subr.bf16.mxu0 0
    %1060 = vmatpush1.bf16.msra.mxu0 0
    %1061 = vmatprep.subr.bf16.mxu0 0
    %1062 = vmatpush1.bf16.msra.mxu0 0
    %1063 = vmatprep.subr.bf16.mxu0 0
    %1064 = vmatpush1.bf16.msra.mxu0 0
    %1065 = vmatprep.mubr.bf16.mxu0 0
    %1066 = vmatmul.mubr.bf16.gmra.mrb[0].mxu0 %v1007
    %v1067 = vpop.f32.mrb[0].mxu0
    %v1068 = vadd.f32 %v928, %v1067
    %v1069 = vpop.f32.mrb[0].mxu0
    %v1070 = vpop.f32.mrb[0].mxu0
    %v1071 = vadd.f32 %v931, %v1070
    %v1072 = vpop.f32.mrb[0].mxu0
    %1073 = vmatprep.mubr.bf16.mxu0 0
    %1074 = vmatmul.mubr.bf16.gmra.mrb[0].mxu0 %v1010
    %v1075 = vpop.f32.mrb[0].mxu0
    %v1076 = vadd.f32 %v936, %v1075
    %v1077 = vpop.f32.mrb[0].mxu0
    %v1078 = vpop.f32.mrb[0].mxu0
    %v1079 = vadd.f32 %v939, %v1078
    %v1080 = vpop.f32.mrb[0].mxu0
    %1081 = vmatprep.mubr.bf16.mxu0 0
    %1082 = vmatmul.mubr.bf16.gmra.mrb[0].mxu0 %v1013
    %v1083 = vpop.f32.mrb[0].mxu0
    %v1084 = vadd.f32 %v944, %v1083
    %v1085 = vpop.f32.mrb[0].mxu0
    %v1086 = vpop.f32.mrb[0].mxu0
    %v1087 = vadd.f32 %v947, %v1086
    %v1088 = vpop.f32.mrb[0].mxu0
    %1089 = vmatprep.mubr.bf16.mxu0 0
    %1090 = vmatmul.mubr.bf16.gmra.mrb[0].mxu0 %v1016
    %v1091 = vpop.f32.mrb[0].mxu0
    %v1092 = vadd.f32 %v952, %v1091
    %v1093 = vpop.f32.mrb[0].mxu0
    %v1094 = vpop.f32.mrb[0].mxu0
    %v1095 = vadd.f32 %v955, %v1094
    %v1096 = vpop.f32.mrb[0].mxu0
    %1097 = vmatprep.mubr.bf16.mxu0 0
    %1098 = vmatmul.mubr.bf16.gmra.mrb[0].mxu0 %v1019
    %v1099 = vpop.f32.mrb[0].mxu0
    %v1100 = vadd.f32 %v960, %v1099
    %v1101 = vpop.f32.mrb[0].mxu0
    %v1102 = vpop.f32.mrb[0].mxu0
    %v1103 = vadd.f32 %v963, %v1102
    %v1104 = vpop.f32.mrb[0].mxu0
    %1105 = vmatprep.mubr.bf16.mxu0 0
    %1106 = vmatmul.mubr.bf16.gmra.mrb[0].mxu0 %v1022
    %v1107 = vpop.f32.mrb[0].mxu0
    %v1108 = vadd.f32 %v968, %v1107
    %v1109 = vpop.f32.mrb[0].mxu0
    %v1110 = vpop.f32.mrb[0].mxu0
    %v1111 = vadd.f32 %v971, %v1110
    %v1112 = vpop.f32.mrb[0].mxu0
    %1113 = vmatprep.mubr.bf16.mxu0 0
    %1114 = vmatmul.mubr.bf16.gmra.mrb[0].mxu0 %v1025
    %v1115 = vpop.f32.mrb[0].mxu0
    %v1116 = vadd.f32 %v976, %v1115
    %v1117 = vpop.f32.mrb[0].mxu0
    %v1118 = vpop.f32.mrb[0].mxu0
    %v1119 = vadd.f32 %v979, %v1118
    %v1120 = vpop.f32.mrb[0].mxu0
    %1121 = vmatprep.mubr.bf16.mxu0 0
    %1122 = vmatmul.mubr.bf16.gmra.mrb[0].mxu0 %v1028
    %v1123 = vpop.f32.mrb[0].mxu0
    %v1124 = vadd.f32 %v984, %v1123
    %v1125 = vpop.f32.mrb[0].mxu0
    %v1126 = vpop.f32.mrb[0].mxu0
    %v1127 = vadd.f32 %v987, %v1126
    %v1128 = vpop.f32.mrb[0].mxu0
    %1129 = vdwg.mxu0
    %v1130 = vmax.f32 %v1068, %v1084
    %v1131 = vmax.f32 %v1071, %v1087
    %v1132 = vmax.f32 %v1076, %v1092
    %v1133 = vmax.f32 %v1079, %v1095
    %v1134 = vmax.f32 %v1130, %v1100
    %v1135 = vmax.f32 %v1131, %v1103
    %v1136 = vmax.f32 %v1132, %v1108
    %v1137 = vmax.f32 %v1133, %v1111
    %v1138 = vmax.f32 %v1134, %v1116
    %v1139 = vmax.f32 %v1135, %v1119
    %v1140 = vmax.f32 %v1136, %v1124
    %v1141 = vmax.f32 %v1137, %v1127
    %v1142 = vmax.f32 %v1138, %v1139
    %v1143 = vmax.f32 %v1140, %v1141
    %v1144 = vmax.f32 %v1142, %v1143
    %v1145 = vrot.slane %v1144, 4
    %v1146 = vmax.f32 %v1144, %v1145
    %v1147 = vrot.slane %v1146, 2
    %v1148 = vmax.f32 %v1146, %v1147
    %v1149 = vrot.slane %v1148, 1
    %v1150 = vmax.f32 %v1148, %v1149
    %v1151 = vsub.f32 %v1068, %v1150
    %v1152 = vsub.f32 %v1071, %v1150
    %v1153 = vsub.f32 %v1076, %v1150
    %v1154 = vsub.f32 %v1079, %v1150
    %v1155 = vsub.f32 %v1084, %v1150
    %v1156 = vsub.f32 %v1087, %v1150
    %v1157 = vsub.f32 %v1092, %v1150
    %v1158 = vsub.f32 %v1095, %v1150
    %v1159 = vsub.f32 %v1100, %v1150
    %v1160 = vsub.f32 %v1103, %v1150
    %v1161 = vsub.f32 %v1108, %v1150
    %v1162 = vsub.f32 %v1111, %v1150
    %v1163 = vsub.f32 %v1116, %v1150
    %v1164 = vsub.f32 %v1119, %v1150
    %v1165 = vsub.f32 %v1124, %v1150
    %v1166 = vsub.f32 %v1127, %v1150
    %v1167 = vmul.f32 %v1151, 1.442695
    %v1168 = vpow.pop %v1167
    %v1169 = vmul.f32 %v1152, 1.442695
    %v1170 = vpow.pop %v1169
    %v1171 = vmul.f32 %v1153, 1.442695
    %v1172 = vpow.pop %v1171
    %v1173 = vmul.f32 %v1154, 1.442695
    %v1174 = vpow.pop %v1173
    %v1175 = vmul.f32 %v1155, 1.442695
    %v1176 = vpow.pop %v1175
    %v1177 = vmul.f32 %v1156, 1.442695
    %v1178 = vpow.pop %v1177
    %v1179 = vmul.f32 %v1157, 1.442695
    %v1180 = vpow.pop %v1179
    %v1181 = vmul.f32 %v1158, 1.442695
    %v1182 = vpow.pop %v1181
    %v1183 = vmul.f32 %v1159, 1.442695
    %v1184 = vpow.pop %v1183
    %v1185 = vmul.f32 %v1160, 1.442695
    %v1186 = vpow.pop %v1185
    %v1187 = vmul.f32 %v1161, 1.442695
    %v1188 = vpow.pop %v1187
    %v1189 = vmul.f32 %v1162, 1.442695
    %v1190 = vpow.pop %v1189
    %v1191 = vmul.f32 %v1163, 1.442695
    %v1192 = vpow.pop %v1191
    %v1193 = vmul.f32 %v1164, 1.442695
    %v1194 = vpow.pop %v1193
    %v1195 = vmul.f32 %v1165, 1.442695
    %v1196 = vpow.pop %v1195
    %v1197 = vmul.f32 %v1166, 1.442695
    %v1198 = vpow.pop %v1197
    %v1199 = vadd.f32 %v1168, %v1170
    %v1200 = vadd.f32 %v1199, %v1172
    %v1201 = vadd.f32 %v1200, %v1174
    %v1202 = vadd.f32 %v1201, %v1176
    %v1203 = vadd.f32 %v1202, %v1178
    %v1204 = vadd.f32 %v1203, %v1180
    %v1205 = vadd.f32 %v1204, %v1182
    %v1206 = vadd.f32 %v1205, %v1184
    %v1207 = vadd.f32 %v1206, %v1186
    %v1208 = vadd.f32 %v1207, %v1188
    %v1209 = vadd.f32 %v1208, %v1190
    %v1210 = vadd.f32 %v1209, %v1192
    %v1211 = vadd.f32 %v1210, %v1194
    %v1212 = vadd.f32 %v1211, %v1196
    %v1213 = vadd.f32 %v1212, %v1198
    %v1214 = vrot.slane %v1213, 4
    %v1215 = vadd.f32 %v1213, %v1214
    %v1216 = vrot.slane %v1215, 2
    %v1217 = vadd.f32 %v1215, %v1216
    %v1218 = vrot.slane %v1217, 1
    %v1219 = vadd.f32 %v1217, %v1218
    %v1220 = vrcp.pop %v1219
    %v1221 = vpack.c.bf16 %v1170, %v1168
    %v1222 = vpack.c.bf16 %v1174, %v1172
    %v1223 = vpack.c.bf16 %v1178, %v1176
    %v1224 = vpack.c.bf16 %v1182, %v1180
    %v1225 = vpack.c.bf16 %v1186, %v1184
    %v1226 = vpack.c.bf16 %v1190, %v1188
    %v1227 = vpack.c.bf16 %v1194, %v1192
    %v1228 = vpack.c.bf16 %v1198, %v1196
    %v1229 = vmul.f32 %v840, %v1220
    %v1230 = vpack.c.bf16 %v1229, %v1229
    %v1231 = vmul.f32 %v842, %v1220
    %v1232 = vpack.c.bf16 %v1231, %v1231
    %1233 = vmatprep.subr.bf16.mxu0 0
    %1234 = vmatpush1.bf16.xpose.msra.mxu0 %v1221
    %1235 = vmatprep.subr.bf16.mxu0 0
    %1236 = vmatpush1.bf16.xpose.msra.mxu0 %v1222
    %1237 = vmatprep.subr.bf16.mxu0 0
    %1238 = vmatpush1.bf16.xpose.msra.mxu0 %v1223
    %1239 = vmatprep.subr.bf16.mxu0 0
    %1240 = vmatpush1.bf16.xpose.msra.mxu0 %v1224
    %1241 = vmatprep.subr.bf16.mxu0 0
    %1242 = vmatpush1.bf16.xpose.msra.mxu0 %v1225
    %1243 = vmatprep.subr.bf16.mxu0 0
    %1244 = vmatpush1.bf16.xpose.msra.mxu0 %v1226
    %1245 = vmatprep.subr.bf16.mxu0 0
    %1246 = vmatpush1.bf16.xpose.msra.mxu0 %v1227
    %1247 = vmatprep.subr.bf16.mxu0 0
    %1248 = vmatpush1.bf16.xpose.msra.mxu0 %v1228
    %1249 = vmatprep.subr.bf16.mxu0 0
    %1250 = vmatpush1.bf16.xpose.msra.mxu0 0
    %1251 = vmatprep.subr.bf16.mxu0 0
    %1252 = vmatpush1.bf16.xpose.msra.mxu0 0
    %1253 = vmatprep.subr.bf16.mxu0 0
    %1254 = vmatpush1.bf16.xpose.msra.mxu0 0
    %1255 = vmatprep.subr.bf16.mxu0 0
    %1256 = vmatpush1.bf16.xpose.msra.mxu0 0
    %1257 = vmatprep.subr.bf16.mxu0 0
    %1258 = vmatpush1.bf16.xpose.msra.mxu0 0
    %1259 = vmatprep.subr.bf16.mxu0 0
    %1260 = vmatpush1.bf16.xpose.msra.mxu0 0
    %1261 = vmatprep.subr.bf16.mxu0 0
    %1262 = vmatpush1.bf16.xpose.msra.mxu0 0
    %1263 = vmatprep.subr.bf16.mxu0 0
    %1264 = vmatpush1.bf16.xpose.msra.mxu0 0
    %1265 = vmatprep.mubr.bf16.mxu0 0
    %1266 = vmatmul.mubr.bf16.gmra.mrb[0].mxu0 %v1230
    %v1267 = vpop.f32.mrb[0].mxu0
    %v1268 = vadd.f32 0.0, %v1267
    %v1269 = vpop.f32.mrb[0].mxu0
    %v1270 = vpop.f32.mrb[0].mxu0
    %v1271 = vpop.f32.mrb[0].mxu0
    %1272 = vdwg.mxu0
    %1273 = vmatprep.subr.bf16.mxu0 0
    %1274 = vmatpush1.bf16.xpose.msra.mxu0 %v1221
    %1275 = vmatprep.subr.bf16.mxu0 0
    %1276 = vmatpush1.bf16.xpose.msra.mxu0 %v1222
    %1277 = vmatprep.subr.bf16.mxu0 0
    %1278 = vmatpush1.bf16.xpose.msra.mxu0 %v1223
    %1279 = vmatprep.subr.bf16.mxu0 0
    %1280 = vmatpush1.bf16.xpose.msra.mxu0 %v1224
    %1281 = vmatprep.subr.bf16.mxu0 0
    %1282 = vmatpush1.bf16.xpose.msra.mxu0 %v1225
    %1283 = vmatprep.subr.bf16.mxu0 0
    %1284 = vmatpush1.bf16.xpose.msra.mxu0 %v1226
    %1285 = vmatprep.subr.bf16.mxu0 0
    %1286 = vmatpush1.bf16.xpose.msra.mxu0 %v1227
    %1287 = vmatprep.subr.bf16.mxu0 0
    %1288 = vmatpush1.bf16.xpose.msra.mxu0 %v1228
    %1289 = vmatprep.subr.bf16.mxu0 0
    %1290 = vmatpush1.bf16.xpose.msra.mxu0 0
    %1291 = vmatprep.subr.bf16.mxu0 0
    %1292 = vmatpush1.bf16.xpose.msra.mxu0 0
    %1293 = vmatprep.subr.bf16.mxu0 0
    %1294 = vmatpush1.bf16.xpose.msra.mxu0 0
    %1295 = vmatprep.subr.bf16.mxu0 0
    %1296 = vmatpush1.bf16.xpose.msra.mxu0 0
    %1297 = vmatprep.subr.bf16.mxu0 0
    %1298 = vmatpush1.bf16.xpose.msra.mxu0 0
    %1299 = vmatprep.subr.bf16.mxu0 0
    %1300 = vmatpush1.bf16.xpose.msra.mxu0 0
    %1301 = vmatprep.subr.bf16.mxu0 0
    %1302 = vmatpush1.bf16.xpose.msra.mxu0 0
    %1303 = vmatprep.subr.bf16.mxu0 0
    %1304 = vmatpush1.bf16.xpose.msra.mxu0 0
    %1305 = vmatprep.mubr.bf16.mxu0 0
    %1306 = vmatmul.mubr.bf16.gmra.mrb[0].mxu0 %v1232
    %v1307 = vpop.f32.mrb[0].mxu0
    %v1308 = vadd.f32 0.0, %v1307
    %v1309 = vpop.f32.mrb[0].mxu0
    %v1310 = vpop.f32.mrb[0].mxu0
    %v1311 = vpop.f32.mrb[0].mxu0
    %1312 = vdwg.mxu0
    %v1313 = vpack.c.bf16 %v1268, %v1268
    %v1314 = vpack.c.bf16 %v1308, %v1308
    %v1316 = vsel %vm229, %v1313, 0
    %v1319 = vsel %vm229, %v1314, 0
    %1321 = vmatprep.subr.bf16.mxu0 %v1319
    %1322 = vmatpush1.bf16.msra.mxu0 %v1316
    %1323 = vmatprep.subr.bf16.mxu0 0
    %1324 = vmatpush1.bf16.msra.mxu0 0
    %1325 = vmatprep.subr.bf16.mxu0 0
    %1326 = vmatpush1.bf16.msra.mxu0 0
    %1327 = vmatprep.subr.bf16.mxu0 0
    %1328 = vmatpush1.bf16.msra.mxu0 0
    %1329 = vmatprep.subr.bf16.mxu0 0
    %1330 = vmatpush1.bf16.msra.mxu0 0
    %1331 = vmatprep.subr.bf16.mxu0 0
    %1332 = vmatpush1.bf16.msra.mxu0 0
    %1333 = vmatprep.subr.bf16.mxu0 0
    %1334 = vmatpush1.bf16.msra.mxu0 0
    %1335 = vmatprep.subr.bf16.mxu0 0
    %1336 = vmatpush1.bf16.msra.mxu0 0
    %1337 = vmatprep.subr.bf16.mxu0 0
    %1338 = vmatpush1.bf16.msra.mxu0 0
    %1339 = vmatprep.subr.bf16.mxu0 0
    %1340 = vmatpush1.bf16.msra.mxu0 0
    %1341 = vmatprep.subr.bf16.mxu0 0
    %1342 = vmatpush1.bf16.msra.mxu0 0
    %1343 = vmatprep.subr.bf16.mxu0 0
    %1344 = vmatpush1.bf16.msra.mxu0 0
    %1345 = vmatprep.subr.bf16.mxu0 0
    %1346 = vmatpush1.bf16.msra.mxu0 0
    %1347 = vmatprep.subr.bf16.mxu0 0
    %1348 = vmatpush1.bf16.msra.mxu0 0
    %1349 = vmatprep.subr.bf16.mxu0 0
    %1350 = vmatpush1.bf16.msra.mxu0 0
    %1351 = vmatprep.subr.bf16.mxu0 0
    %1352 = vmatpush1.bf16.msra.mxu0 0
    %1353 = vmatprep.mubr.bf16.mxu0 0
    %1354 = vmatmul.mubr.bf16.gmra.mrb[0].mxu0 %v656
    %v1355 = vpop.f32.mrb[0].mxu0
    %v1356 = vadd.f32 %v711, %v1355
    %v1357 = vpop.f32.mrb[0].mxu0
    %v1358 = vadd.f32 %v713, %v1357
    %v1359 = vpop.f32.mrb[0].mxu0
    %v1360 = vpop.f32.mrb[0].mxu0
    %1361 = vdwg.mxu0
    %v1364 = vcombine.low %v1356, %v1358
    %s1366 = scalar_lea.vmem [#allocation5], 8
    %1367 = vst [vmem:[%s1366] sm:$0xff] %v1364
    // Predicated region
    $region26: #{tpu_custom_call.1} parent=1 // pred_check
      _
    $region27: #{tpu_custom_call.1} parent=1 // pred_check_branch
      %1369 = sbr.rel (0) target = $region29
    $region28: #{tpu_custom_call.1} parent=1 // pred_region
      %s1371 = ssub.s32 256, 256
      %1372 = vsyncadd [#allocation4], %s1371
      %s1373 = sshll.u32 [#allocation5], 4
      %s1374 = int_to_ptr.vmem [resolvable:$true] %s1373
      %1379 = dma.vmem_to_hbm [thread:$0]  %s1374, 256, %s5, [#allocation4], 128, 128, 8
    $region29: #{tpu_custom_call.1} parent=1 // pred_fallthru
      _
    // Predicated region
    $region30: #{tpu_custom_call.1} parent=1 // pred_check
      _
    $region31: #{tpu_custom_call.1} parent=1 // pred_check_branch
      %1381 = sbr.rel (0) target = $region33
    $region32: #{tpu_custom_call.1} parent=1 // pred_region
      %1382 = dma.done [#allocation4], 256
    $region33: #{tpu_custom_call.1} parent=1 // pred_fallthru
      _
    %1383 = vsyncpa [#allocation3], 1
    %1384 = vsyncpa [#allocation4], 1

</llo_original>
